<compile_context>
chip_gen: v5e
topology: v5e:2x2
jax: 0.10.0
libtpu: 0.0.40
codegen_flags: <defaults>
</compile_context>

<pallas_src>
import functools

import jax
import jax.numpy as jnp
from jax.experimental import pallas as pl
from jax.experimental.pallas import tpu as pltpu


def _contrastive_loss_kernel(q_ref, k_ref, out_ref, kn_ref, acc_ref, *, inv_t, tq,
                             mxu_dtype):
    """One (batch b, query-row-tile t) grid step.

    q_ref:   (1, TQ, C) query row tile of batch b (original input dtype).
    k_ref:   (1, N,  C) full key block of batch b (block index constant along t).
    out_ref: (1, 1, 1)  per-batch sum of NLL (written once at the last row tile).
    kn_ref:  (N, C)     scratch: L1-normalized keys in `mxu_dtype` (built at t == 0).
    acc_ref: (1, 1)     f32 scratch: scalar NLL accumulator.
    """
    t = pl.program_id(1)
    nt = pl.num_programs(1)
    eps = jnp.float32(1e-12)

    @pl.when(t == 0)
    def _init():
        k = k_ref[0].astype(jnp.float32)                                   # (N, C)
        k_norm = jnp.maximum(jnp.sum(jnp.abs(k), axis=-1, keepdims=True), eps)
        kn_ref[...] = (k / k_norm).astype(kn_ref.dtype)
        acc_ref[...] = jnp.zeros_like(acc_ref)

    # L1-normalize this q row tile and fold 1/temperature into it: every logit built
    # from qn below is already divided by T, so no (TQ, N) rescale pass is needed.
    q = q_ref[0].astype(jnp.float32)                                       # (TQ, C)
    q_norm = jnp.maximum(jnp.sum(jnp.abs(q), axis=-1, keepdims=True), eps)
    qn = q * (jnp.float32(inv_t) / q_norm)                                 # (TQ, C)

    # Positive logits (already scaled by 1/T): <qn_i, kn_{global i}>.
    start = pl.multiple_of(t * tq, tq)
    kn_pos = kn_ref[pl.ds(start, tq), :]                                   # (TQ, C)
    l_pos = jnp.sum(qn * kn_pos.astype(jnp.float32), axis=-1, keepdims=True)  # (TQ, 1)

    # Similarity row block on the MXU: sim[i, j] = <qn_i, kn_j> / T   -> (TQ, N).
    # With mxu_dtype == bf16 (C >= 128), sim's diagonal is bf16-rounded while l_pos is
    # f32 — negligible for the loss; f32 path (default here) matches exactly.
    sim = jnp.einsum("qc,kc->qk", qn.astype(mxu_dtype), kn_ref[...],
                     preferred_element_type=jnp.float32)

    # Cross-entropy with target 0. Diagonal -inf masking of the reference is redundant
    # because sim[i, global_i] == l_pos[i]; logsumexp over the full row is identical.
    row_max = jnp.max(sim, axis=-1, keepdims=True)                         # (TQ, 1)
    lse = row_max + jnp.log(
        jnp.sum(jnp.exp(sim - row_max), axis=-1, keepdims=True))           # (TQ, 1)

    # Scalar accumulation (review item: avoid lane-1 (TQ, 1) accumulator stores).
    acc_ref[...] += jnp.sum(lse - l_pos, axis=0, keepdims=True)            # (1, 1)

    @pl.when(t == nt - 1)
    def _finalize():
        out_ref[0] = acc_ref[...]


def _vmem_limit_bytes():
    """Generation-aware VMEM limit: ~75% of per-core physical VMEM
    (v5e/v6e: 128 MiB -> 96 MiB, v7x: 64 MiB -> 48 MiB); conservative if unknown."""
    cap = 0
    try:
        cap = int(getattr(pltpu.get_tpu_info(), "vmem_capacity_bytes", 0))
    except Exception:
        cap = 0
    if cap <= 0:
        cap = 64 * 1024 * 1024  # assume the smallest (v7x) when the query fails
    return (3 * cap) // 4


def _pick_row_tile(N, C, in_dtype_bytes, vmem_limit):
    """Largest row tile dividing N whose full VMEM footprint fits the derived budget.

    Accounts for the double-buffered q and k input blocks, the kn scratch, and the
    (TQ, N) f32 in-kernel temporaries.  Never silently returns an oversized tile.
    """
    budget = vmem_limit - 8 * 1024 * 1024          # headroom for Mosaic internal scratch
    fixed = 2 * N * C * in_dtype_bytes + N * C * 4  # double-buffered k block + kn scratch

    def fits(tq):
        per_q = 2 * tq * C * in_dtype_bytes        # double-buffered q blocks
        temps = 3 * tq * N * 4                     # sim, exp(sim), slack (f32)
        return fixed + per_q + temps + tq * C * 4 <= budget

    for tq in (1024, 512, 256, 128):               # 1024 reachable on v5e/v6e budgets
        if N % tq == 0 and fits(tq):
            return tq
    if fits(N):                                    # small or non-128-multiple N
        return N
    # TODO(synk): key-axis tiling with online logsumexp (O(TQ*TK) VMEM) for very large N.
    raise NotImplementedError(
        f"contrastive_loss_sup: N={N}, C={C} needs a key-tiled online-logsumexp "
        "kernel to fit VMEM on this TPU generation.")


def contrastive_loss_sup(feat_q, feat_k, temperature=0.07, base_temperature=0.07,
                         use_bf16_matmul=None):
    """JAX/Pallas equivalent of the PyTorch module's forward. Inputs are NCHW."""
    assert feat_q.shape == feat_k.shape, (feat_q.shape, feat_k.shape)
    del base_temperature  # unused by the reference forward pass

    B, C = feat_q.shape[0], feat_q.shape[1]
    # (B, C, H, W) -> (B, C, N) -> (B, N, C).  No f32 up-cast here: blocks are DMA'd in
    # the input dtype and up-cast inside the kernel.
    # TODO(synk): (B, C, N) reshape-only layout (no wrapper transpose) with an in-kernel
    # transposed-lhs matmul would remove this HBM pass entirely.
    q = jnp.reshape(feat_q, (B, C, -1)).transpose(0, 2, 1)
    k = jnp.reshape(feat_k, (B, C, -1)).transpose(0, 2, 1)
    N = q.shape[1]

    vmem_limit = _vmem_limit_bytes()
    tq = _pick_row_tile(N, C, q.dtype.itemsize, vmem_limit)
    nt = pl.cdiv(N, tq)

    if use_bf16_matmul is None:
        use_bf16_matmul = C >= 128  # MXU win only when the contraction is wide enough
    mxu_dtype = jnp.bfloat16 if use_bf16_matmul else jnp.float32

    kernel = functools.partial(
        _contrastive_loss_kernel, inv_t=float(1.0 / temperature), tq=tq,
        mxu_dtype=mxu_dtype)

    per_batch = pl.pallas_call(
        kernel,
        out_shape=jax.ShapeDtypeStruct((B, 1, 1), jnp.float32),
        grid=(B, nt),
        in_specs=[
            pl.BlockSpec((1, tq, C), lambda b, t: (b, t, 0)),  # streamed q row tiles
            # TODO(synk): single-buffer this constant-per-batch block (pl.Buffered(1) or
            # manual DMA) to halve its VMEM footprint for very large N.
            pl.BlockSpec((1, N, C), lambda b, t: (b, 0, 0)),   # k resident across t
        ],
        out_specs=pl.BlockSpec((1, 1, 1), lambda b, t: (b, 0, 0)),
        scratch_shapes=[
            pltpu.VMEM((N, C), mxu_dtype),     # normalized keys (built once per batch)
            pltpu.VMEM((1, 1), jnp.float32),   # scalar NLL accumulator
        ],
        compiler_params=pltpu.CompilerParams(
            # TODO(synk): for B == 1 on v7x, emit per-(b, t) partials so the row-tile
            # axis can also be "parallel" (megacore) instead of "arbitrary".
            dimension_semantics=("parallel", "arbitrary"),
            vmem_limit_bytes=int(vmem_limit),
        ),
    )(q, k)

    return jnp.sum(per_batch) / (B * N)


def _reference_loss(feat_q, feat_k, temperature=0.07):
    """Pure-JAX reference mirroring the PyTorch forward (for a sanity check)."""
    B, C = feat_q.shape[0], feat_q.shape[1]
    q = jnp.reshape(feat_q, (B, C, -1)).transpose(0, 2, 1).astype(jnp.float32)
    k = jnp.reshape(feat_k, (B, C, -1)).transpose(0, 2, 1).astype(jnp.float32)
    eps = 1e-12
    q = q / jnp.maximum(jnp.sum(jnp.abs(q), axis=-1, keepdims=True), eps)
    k = k / jnp.maximum(jnp.sum(jnp.abs(k), axis=-1, keepdims=True), eps)
    N = q.shape[1]
    l_pos = jnp.sum(q * k, axis=-1).reshape(-1, 1)                   # (B*N, 1)
    l_neg = jnp.einsum("bnc,bmc->bnm", q, k)                          # (B, N, N)
    l_neg = jnp.where(jnp.eye(N, dtype=bool)[None], -jnp.inf, l_neg).reshape(-1, N)
    out = jnp.concatenate([l_pos, l_neg], axis=1) / temperature       # (B*N, 1+N)
    lse = jax.nn.logsumexp(out, axis=1)
    return jnp.mean(lse - out[:, 0])


if __name__ == "__main__":
    key = jax.random.PRNGKey(0)
    kq, kk = jax.random.split(key)
    B, C, H, W = 2, 4, 16, 16
    feat_q = jax.random.normal(kq, (B, C, H, W), dtype=jnp.float32)
    feat_k = jax.random.normal(kk, (B, C, H, W), dtype=jnp.float32)

    loss = jax.block_until_ready(contrastive_loss_sup(feat_q, feat_k))
    ref = jax.block_until_ready(_reference_loss(feat_q, feat_k))

    assert jnp.isfinite(loss), loss
    assert jnp.allclose(loss, ref, rtol=1e-5, atol=1e-4), (loss, ref)

    print("KERNEL_OK")
</pallas_src>

<mosaic_0001>
module attributes {stable_mosaic.version = 11 : i64} {
  func.func @_contrastive_loss_kernel(%arg0: i32, %arg1: i32, %arg2: memref<1x256x4xf32, #tpu.memory_space<vmem>>, %arg3: memref<1x256x4xf32, #tpu.memory_space<vmem>>, %arg4: memref<1x1x1xf32, #tpu.memory_space<vmem>>, %arg5: memref<256x4xf32, #tpu.memory_space<vmem>>, %arg6: memref<1x1xf32, #tpu.memory_space<vmem>>) attributes {dimension_semantics = [#tpu.dimension_semantics<parallel>, #tpu.dimension_semantics<arbitrary>], iteration_bounds = array<i64: 2, 1>, scalar_prefetch = 0 : i64, scratch_operands = 2 : i64, tpu.core_type = #tpu.core_type<tc>, window_params = [{transform_indices = @transform_0, window_bounds = array<i64: 1, 256, 4>}, {transform_indices = @transform_1, window_bounds = array<i64: 1, 256, 4>}, {transform_indices = @transform_2, window_bounds = array<i64: 1, 1, 1>}]} {
    %c0_i32 = arith.constant 0 : i32
    %0 = arith.cmpi eq, %arg1, %c0_i32 : i32
    %1 = arith.extui %0 : i1 to i32
    %cst = arith.constant 9.99999996E-13 : f32
    %c0_i32_0 = arith.constant 0 : i32
    %2 = arith.cmpi ne, %1, %c0_i32_0 : i32
    scf.if %2 {
      %c0_20 = arith.constant 0 : index
      %c0_21 = arith.constant 0 : index
      %c0_22 = arith.constant 0 : index
      %41 = vector.load %arg3[%c0_20, %c0_21, %c0_22] : memref<1x256x4xf32, #tpu.memory_space<vmem>>, vector<1x256x4xf32>
      %42 = vector.shape_cast %41 : vector<1x256x4xf32> to vector<256x4xf32>
      %43 = math.absf %42 : vector<256x4xf32>
      %cst_23 = arith.constant dense<0.000000e+00> : vector<256xf32>
      %44 = vector.multi_reduction <add>, %43, %cst_23 [1] : vector<256x4xf32> to vector<256xf32>
      %45 = vector.shape_cast %44 : vector<256xf32> to vector<256x1xf32>
      %46 = vector.broadcast %cst : f32 to vector<256x1xf32>
      %47 = arith.maximumf %45, %46 : vector<256x1xf32>
      %48 = vector.broadcast %47 : vector<256x1xf32> to vector<256x4xf32>
      %49 = arith.divf %42, %48 : vector<256x4xf32>
      %c0_24 = arith.constant 0 : index
      %c0_25 = arith.constant 0 : index
      %50 = vector.load %arg5[%c0_24, %c0_25] : memref<256x4xf32, #tpu.memory_space<vmem>>, vector<256x4xf32>
      tpu.vector_store %arg5[%c0_24, %c0_25], %49 {strides = array<i32>} : memref<256x4xf32, #tpu.memory_space<vmem>>, vector<256x4xf32>,
      %cst_26 = arith.constant 0.000000e+00 : f32
      %51 = vector.broadcast %cst_26 : f32 to vector<1x1xf32>
      %c0_27 = arith.constant 0 : index
      %c0_28 = arith.constant 0 : index
      %52 = vector.load %arg6[%c0_27, %c0_28] : memref<1x1xf32, #tpu.memory_space<vmem>>, vector<1x1xf32>
      tpu.vector_store %arg6[%c0_27, %c0_28], %51 {strides = array<i32>} : memref<1x1xf32, #tpu.memory_space<vmem>>, vector<1x1xf32>,
    } else {
    }
    %c0 = arith.constant 0 : index
    %c0_1 = arith.constant 0 : index
    %c0_2 = arith.constant 0 : index
    %3 = vector.load %arg2[%c0, %c0_1, %c0_2] : memref<1x256x4xf32, #tpu.memory_space<vmem>>, vector<1x256x4xf32>
    %4 = vector.shape_cast %3 : vector<1x256x4xf32> to vector<256x4xf32>
    %5 = math.absf %4 : vector<256x4xf32>
    %cst_3 = arith.constant dense<0.000000e+00> : vector<256xf32>
    %6 = vector.multi_reduction <add>, %5, %cst_3 [1] : vector<256x4xf32> to vector<256xf32>
    %7 = vector.shape_cast %6 : vector<256xf32> to vector<256x1xf32>
    %cst_4 = arith.constant 9.99999996E-13 : f32
    %8 = vector.broadcast %cst_4 : f32 to vector<256x1xf32>
    %9 = arith.maximumf %7, %8 : vector<256x1xf32>
    %cst_5 = arith.constant 14.2857141 : f32
    %10 = vector.broadcast %cst_5 : f32 to vector<256x1xf32>
    %11 = arith.divf %10, %9 : vector<256x1xf32>
    %12 = vector.broadcast %11 : vector<256x1xf32> to vector<256x4xf32>
    %13 = arith.mulf %4, %12 : vector<256x4xf32>
    %c256_i32 = arith.constant 256 : i32
    %14 = arith.muli %arg1, %c256_i32 : i32
    %15 = tpu.assume_multiple %14, 256 : i32
    %16 = arith.index_cast %15 : i32 to index
    %c0_6 = arith.constant 0 : index
    %17 = vector.load %arg5[%16, %c0_6] : memref<256x4xf32, #tpu.memory_space<vmem>>, vector<256x4xf32>
    %18 = arith.mulf %13, %17 : vector<256x4xf32>
    %cst_7 = arith.constant dense<0.000000e+00> : vector<256xf32>
    %19 = vector.multi_reduction <add>, %18, %cst_7 [1] : vector<256x4xf32> to vector<256xf32>
    %20 = vector.shape_cast %19 : vector<256xf32> to vector<256x1xf32>
    %c0_8 = arith.constant 0 : index
    %c0_9 = arith.constant 0 : index
    %21 = vector.load %arg5[%c0_8, %c0_9] : memref<256x4xf32, #tpu.memory_space<vmem>>, vector<256x4xf32>
    "tpu.trace_start"() <{level = 10 : i32, message = "qc,kc->qk"}> : () -> ()
    %cst_10 = arith.constant dense<0.000000e+00> : vector<256x256xf32>
    %22 = tpu.matmul %13, %21, %cst_10 {dimension_numbers = #tpu.dot_dimension_numbers<[1], [1], [0], [0], [0, 0, 1, 0], [], []>} : vector<256x4xf32>, vector<256x4xf32>, vector<256x256xf32> -> vector<256x256xf32>
    "tpu.trace_stop"() : () -> ()
    %cst_11 = arith.constant dense<0xFF800000> : vector<256xf32>
    %23 = vector.multi_reduction <maximumf>, %22, %cst_11 [1] : vector<256x256xf32> to vector<256xf32>
    %24 = vector.shape_cast %23 : vector<256xf32> to vector<256x1xf32>
    %25 = vector.broadcast %24 : vector<256x1xf32> to vector<256x256xf32>
    %26 = arith.subf %22, %25 : vector<256x256xf32>
    %27 = math.exp %26 : vector<256x256xf32>
    %cst_12 = arith.constant dense<0.000000e+00> : vector<256xf32>
    %28 = vector.multi_reduction <add>, %27, %cst_12 [1] : vector<256x256xf32> to vector<256xf32>
    %29 = vector.shape_cast %28 : vector<256xf32> to vector<256x1xf32>
    %30 = math.log %29 : vector<256x1xf32>
    %31 = arith.addf %24, %30 : vector<256x1xf32>
    %c0_13 = arith.constant 0 : index
    %c0_14 = arith.constant 0 : index
    %32 = vector.load %arg6[%c0_13, %c0_14] : memref<1x1xf32, #tpu.memory_space<vmem>>, vector<1x1xf32>
    %33 = arith.subf %31, %20 : vector<256x1xf32>
    %cst_15 = arith.constant dense<0.000000e+00> : vector<1xf32>
    %34 = vector.multi_reduction <add>, %33, %cst_15 [0] : vector<256x1xf32> to vector<1xf32>
    %35 = vector.shape_cast %34 : vector<1xf32> to vector<1x1xf32>
    %36 = arith.addf %32, %35 : vector<1x1xf32>
    %c0_16 = arith.constant 0 : index
    %c0_17 = arith.constant 0 : index
    %37 = vector.load %arg6[%c0_16, %c0_17] : memref<1x1xf32, #tpu.memory_space<vmem>>, vector<1x1xf32>
    tpu.vector_store %arg6[%c0_16, %c0_17], %36 {strides = array<i32>} : memref<1x1xf32, #tpu.memory_space<vmem>>, vector<1x1xf32>,
    %c0_i32_18 = arith.constant 0 : i32
    %38 = arith.cmpi eq, %arg1, %c0_i32_18 : i32
    %39 = arith.extui %38 : i1 to i32
    %c0_i32_19 = arith.constant 0 : i32
    %40 = arith.cmpi ne, %39, %c0_i32_19 : i32
    scf.if %40 {
      %c0_20 = arith.constant 0 : index
      %c0_21 = arith.constant 0 : index
      %41 = vector.load %arg6[%c0_20, %c0_21] : memref<1x1xf32, #tpu.memory_space<vmem>>, vector<1x1xf32>
      %c0_22 = arith.constant 0 : index
      %c0_23 = arith.constant 0 : index
      %c0_24 = arith.constant 0 : index
      %42 = vector.load %arg4[%c0_22, %c0_23, %c0_24] : memref<1x1x1xf32, #tpu.memory_space<vmem>>, vector<1x1x1xf32>
      %43 = vector.shape_cast %42 : vector<1x1x1xf32> to vector<1x1xf32>
      %44 = vector.shape_cast %41 : vector<1x1xf32> to vector<1x1x1xf32>
      tpu.vector_store %arg4[%c0_22, %c0_23, %c0_24], %44 {strides = array<i32>} : memref<1x1x1xf32, #tpu.memory_space<vmem>>, vector<1x1x1xf32>,
    } else {
    }
    return
  }
  func.func @transform_0(%arg0: i32, %arg1: i32) -> (i32, i32, i32) {
    %c0_i32 = arith.constant 0 : i32
    %c0_i32_0 = arith.constant 0 : i32
    return %arg0, %arg1, %c0_i32 : i32, i32, i32
  }
  func.func @transform_1(%arg0: i32, %arg1: i32) -> (i32, i32, i32) {
    %c0_i32 = arith.constant 0 : i32
    %c0_i32_0 = arith.constant 0 : i32
    %c0_i32_1 = arith.constant 0 : i32
    return %arg0, %c0_i32, %c0_i32_0 : i32, i32, i32
  }
  func.func @transform_2(%arg0: i32, %arg1: i32) -> (i32, i32, i32) {
    %c0_i32 = arith.constant 0 : i32
    %c0_i32_0 = arith.constant 0 : i32
    %c0_i32_1 = arith.constant 0 : i32
    return %arg0, %c0_i32, %c0_i32_0 : i32, i32, i32
  }
}

</mosaic_0001>

<llo_original>
// kernel: tpu_custom_call.1
$region0: #{tpu_custom_call.1}
  #allocation0 [shape = 'u32[]', space=smem, size = 0x4, offset = 0x4, fixed_abs, tag = 'smem constant byte address 0x4 - core index']
  #allocation1 [shape = 'u32[72,128]{1,0:T(1,128)}', space=vmem, size = 0x9000, scoped, tag = 'internal scratch']
  #allocation2 [shape = 'f32[256,4]{1,0:T(8,128)}', space=vmem, size = 0x20000, scoped, tag = 'scratch operand']
  #allocation3 [shape = 'f32[1,1]{1,0:T(1,128)}', space=vmem, size = 0x200, scoped, tag = 'scratch operand']
  %s0 = inlined_call_operand.vmem [shape: f32[2,256,4], index: 0, kind: input, shape index: {}]
  %s1 = inlined_call_operand.vmem [shape: f32[2,256,4], index: 1, kind: input, shape index: {}]
  %s2 = inlined_call_operand.vmem [shape: f32[2,1,1], index: 2, kind: output, shape index: {}]
  %s3 = sld [smem:[#allocation0]]
  $region49: #{tpu_custom_call.1} parent=0
    _
  %s5 = ssub.s32 1, %s3
  %s6 = scalar_select 0, %s5, %s3
  loop: start=0, step=1, limit=4
  $region2: #{tpu_custom_call.1} parent=0 // loop_pre_header
    _
  $region3: #{tpu_custom_call.1} parent=0 // loop_header
    %s8 = sphi 0, %s12
    %p9 = scmp.ge.s32.totalorder %s8, 4
    %s15 = sphi 0, %s27
    %s16 = sphi 0, %s23
    %s17 = sphi 0, %s15
    %s18 = sphi 0, %s16
    %s19 = sphi 0, %s17
    %s20 = sphi 0, %s18
    %s32 = sphi 0, %s34
    %s35 = sphi 0, %s32
    %s36 = sphi 0, %s35
    %s52 = sphi 0, %s36
    %s58 = sphi 0, %s60
    %s61 = sphi 0, %s58
    %s62 = sphi 0, %s61
    %s78 = sphi 0, %s62
    %s84 = sphi 0, %s86
    %s87 = sphi 0, %s84
    %s88 = sphi 0, %s87
    %s104 = sphi 0, %s88
  $region4: #{tpu_custom_call.1} parent=0 // loop_header_branch
    %11 = sbr.rel (%p9) target = $region8
  $region5: #{tpu_custom_call.1} parent=0 // loop_body
    %s13 = ssub.s32 %s8, 1
    %s14 = ssub.s32 %s8, 2
    %s21 = sadd.s32 1, %s16
    %p22 = scmp.ge.s32.totalorder %s21, 1
    %s23 = scalar_select %p22, 0, %s21
    %s24 = sadd.s32 1, %s15
    %s25 = scalar_select %p22, %s24, %s15
    %p26 = scmp.ge.s32.totalorder %s25, 2
    %s27 = scalar_select %p26, 0, %s25
    %s28 = ssub.s32 %s15, %s27
    %s29 = ssub.s32 %s16, %s23
    %s30 = sor.u32 %s28, %s29
    %p31 = scmp.eq.s32.totalorder %s30, 0
    %s33 = sadd.s32 %s32, 1
    %s34 = scalar_select %p31, %s32, %s33
    %p37 = pneg %p31
    %p38 = scmp.eq.s32.totalorder %s8, 1
    %p39 = por %p37, %p38
    %p40 = scmp.ne.s32.totalorder %s32, %s35
    %p41 = scmp.eq.s32.totalorder %s8, 0
    %p42 = por %p40, %p41
    %p43 = scmp.ne.s32.totalorder %s32, %s35
    %p44 = scmp.eq.s32.totalorder %s13, 1
    %p45 = por %p43, %p44
    %p46 = scmp.ne.s32.totalorder %s35, %s36
    %p47 = scmp.eq.s32.totalorder %s13, 0
    %p48 = por %p46, %p47
    %p49 = scmp.ne.s32.totalorder %s35, %s36
    %p50 = scmp.eq.s32.totalorder %s14, 1
    %p51 = por %p49, %p50
    %p53 = scmp.ne.s32.totalorder %s36, %s52
    %p54 = scmp.eq.s32.totalorder %s14, 0
    %p55 = por %p53, %p54
    %s56 = ssub.s32 %s15, %s27
    %p57 = scmp.eq.s32.totalorder %s56, 0
    %s59 = sadd.s32 %s58, 1
    %s60 = scalar_select %p57, %s58, %s59
    %p63 = pneg %p57
    %p64 = scmp.eq.s32.totalorder %s8, 1
    %p65 = por %p63, %p64
    %p66 = scmp.ne.s32.totalorder %s58, %s61
    %p67 = scmp.eq.s32.totalorder %s8, 0
    %p68 = por %p66, %p67
    %p69 = scmp.ne.s32.totalorder %s58, %s61
    %p70 = scmp.eq.s32.totalorder %s13, 1
    %p71 = por %p69, %p70
    %p72 = scmp.ne.s32.totalorder %s61, %s62
    %p73 = scmp.eq.s32.totalorder %s13, 0
    %p74 = por %p72, %p73
    %p75 = scmp.ne.s32.totalorder %s61, %s62
    %p76 = scmp.eq.s32.totalorder %s14, 1
    %p77 = por %p75, %p76
    %p79 = scmp.ne.s32.totalorder %s62, %s78
    %p80 = scmp.eq.s32.totalorder %s14, 0
    %p81 = por %p79, %p80
    %s82 = ssub.s32 %s15, %s27
    %p83 = scmp.eq.s32.totalorder %s82, 0
    %s85 = sadd.s32 %s84, 1
    %s86 = scalar_select %p83, %s84, %s85
    %p89 = pneg %p83
    %p90 = scmp.eq.s32.totalorder %s8, 1
    %p91 = por %p89, %p90
    %p92 = scmp.ne.s32.totalorder %s84, %s87
    %p93 = scmp.eq.s32.totalorder %s8, 0
    %p94 = por %p92, %p93
    %p95 = scmp.ne.s32.totalorder %s84, %s87
    %p96 = scmp.eq.s32.totalorder %s13, 1
    %p97 = por %p95, %p96
    %p98 = scmp.ne.s32.totalorder %s87, %s88
    %p99 = scmp.eq.s32.totalorder %s13, 0
    %p100 = por %p98, %p99
    %p101 = scmp.ne.s32.totalorder %s87, %s88
    %p102 = scmp.eq.s32.totalorder %s14, 1
    %p103 = por %p101, %p102
    %p105 = scmp.ne.s32.totalorder %s88, %s104
    %p106 = scmp.eq.s32.totalorder %s14, 0
    %p107 = por %p105, %p106
    %p108 = scmp.le.s32.totalorder 1, %s8
    %p109 = scmp.lt.s32.totalorder %s8, 3
    %p110 = pnand %p108, %p109
    %p111 = pneg %p110
    // Predicated region
    $region9: #{tpu_custom_call.1} parent=5 // pred_check
      _
    $region10: #{tpu_custom_call.1} parent=5 // pred_check_branch
      %113 = sbr.rel (%p110) target = $region12
    $region11: #{tpu_custom_call.1} parent=5 // pred_region
      %s114 = ssub.s32 %s8, 1
    $region12: #{tpu_custom_call.1} parent=5 // pred_fallthru
      _
    %p115 = scmp.lt.s32.totalorder %s8, 2
    // Predicated region
    $region13: #{tpu_custom_call.1} parent=5 // pred_check
      %p116 = pneg %p115
    $region14: #{tpu_custom_call.1} parent=5 // pred_check_branch
      %118 = sbr.rel (%p116) target = $region16
    $region15: #{tpu_custom_call.1} parent=5 // pred_region
      // Predicated region
      $region17: #{tpu_custom_call.1} parent=15 // pred_check
        %p119 = pneg %p42
      $region18: #{tpu_custom_call.1} parent=15 // pred_check_branch
        %121 = sbr.rel (%p119) target = $region20
      $region19: #{tpu_custom_call.1} parent=15 // pred_region
        %s122 = smul.u32 32, %s16
        %p123 = scmp.lt.s32.totalorder %s15, 1
        %s124 = scalar_select %p123, %s15, 1
        %p125 = scmp.lt.s32.totalorder %s122, 31
        %s126 = scalar_select %p125, %s122, 31
        %s127 = smul.addr %s124, 32
        %s128 = sadd.s32 %s126, %s127
        %s129 = smul.addr %s128, 8
        %s130 = scalar_lea.vmem %s0, %s129
        %s131 = smul.u32 32, %s16
      $region20: #{tpu_custom_call.1} parent=15 // pred_fallthru
        _
      // Predicated region
      $region21: #{tpu_custom_call.1} parent=15 // pred_check
        %p132 = pneg %p68
      $region22: #{tpu_custom_call.1} parent=15 // pred_check_branch
        %134 = sbr.rel (%p132) target = $region24
      $region23: #{tpu_custom_call.1} parent=15 // pred_region
        %p135 = scmp.lt.s32.totalorder %s15, 1
        %s136 = scalar_select %p135, %s15, 1
        %s137 = smul.addr %s136, 32
        %s138 = smul.addr %s137, 8
        %s139 = scalar_lea.vmem %s1, %s138
      $region24: #{tpu_custom_call.1} parent=15 // pred_fallthru
        _
    $region16: #{tpu_custom_call.1} parent=5 // pred_fallthru
      _
    %p140 = scmp.le.s32.totalorder 1, %s8
    %p141 = scmp.lt.s32.totalorder %s8, 3
    %p142 = pnand %p140, %p141
    %p143 = pneg %p142
    // Predicated region
    $region25: #{tpu_custom_call.1} parent=5 // pred_check
      _
    $region26: #{tpu_custom_call.1} parent=5 // pred_check_branch
      %145 = sbr.rel (%p142) target = $region28
    $region27: #{tpu_custom_call.1} parent=5 // pred_region
      %s146 = ssub.s32 %s8, 1
      %s147 = smul.u32 32, %s18
      %p148 = scmp.lt.s32.totalorder %s17, 1
      %s149 = scalar_select %p148, %s17, 1
      %p150 = scmp.lt.s32.totalorder %s147, 31
      %s151 = scalar_select %p150, %s147, 31
      %s152 = smul.addr %s149, 32
      %s153 = sadd.s32 %s151, %s152
      %s154 = smul.addr %s153, 8
      %s155 = scalar_lea.vmem %s0, %s154
      %p156 = pneg %p48
      %p157 = pneg %p45
      %p158 = scmp.lt.s32.totalorder %s17, 1
      %s159 = scalar_select %p158, %s17, 1
      %s160 = smul.addr %s159, 32
      %s161 = smul.addr %s160, 8
      %s162 = scalar_lea.vmem %s1, %s161
      %p163 = pneg %p74
      %p164 = pneg %p71
      %p165 = pneg %p100
      %p166 = pneg %p97
      %p167 = scmp.lt.s32.totalorder %s17, 1
      %s168 = scalar_select %p167, %s17, 1
      %s169 = scalar_lea.vmem %s2, %s168
      %s170 = smul.u32 32, %s18
      %p171 = scmp.lt.s32.totalorder %s17, 1
      %s172 = scalar_select %p171, %s17, 1
      %p173 = scmp.lt.s32.totalorder %s170, 31
      %s174 = scalar_select %p173, %s170, 31
      %s175 = smul.addr %s172, 32
      %s176 = sadd.s32 %s174, %s175
      %s177 = smul.addr %s176, 8
      %s178 = scalar_lea.vmem %s0, %s177
      %s179 = smul.u32 32, %s18
      %p180 = scmp.lt.s32.totalorder %s17, 1
      %s181 = scalar_select %p180, %s17, 1
      %s182 = smul.addr %s181, 32
      %s183 = smul.addr %s182, 8
      %s184 = scalar_lea.vmem %s1, %s183
      %p185 = scmp.lt.s32.totalorder %s17, 1
      %s186 = scalar_select %p185, %s17, 1
      %s187 = scalar_lea.vmem %s2, %s186
      %p188 = scmp.eq.s32.totalorder %s18, 0
      // Predicated region
      $region29: #{tpu_custom_call.1} parent=27 // pred_check
        %p189 = pneg %p188
      $region30: #{tpu_custom_call.1} parent=27 // pred_check_branch
        %191 = sbr.rel (%p189) target = $region32
      $region31: #{tpu_custom_call.1} parent=27 // pred_region
        %v192 = vld [vmem:[%s184] sm:$0xff]
        %v193 = vld [vmem:[%s184 + $0x8] sm:$0xff]
        %v194 = vld [vmem:[%s184 + $0x10] sm:$0xff]
        %v195 = vld [vmem:[%s184 + $0x18] sm:$0xff]
        %v196 = vld [vmem:[%s184 + $0x20] sm:$0xff]
        %v197 = vld [vmem:[%s184 + $0x28] sm:$0xff]
        %v198 = vld [vmem:[%s184 + $0x30] sm:$0xff]
        %v199 = vld [vmem:[%s184 + $0x38] sm:$0xff]
        %v200 = vld [vmem:[%s184 + $0x40] sm:$0xff]
        %v201 = vld [vmem:[%s184 + $0x48] sm:$0xff]
        %v202 = vld [vmem:[%s184 + $0x50] sm:$0xff]
        %v203 = vld [vmem:[%s184 + $0x58] sm:$0xff]
        %v204 = vld [vmem:[%s184 + $0x60] sm:$0xff]
        %v205 = vld [vmem:[%s184 + $0x68] sm:$0xff]
        %v206 = vld [vmem:[%s184 + $0x70] sm:$0xff]
        %v207 = vld [vmem:[%s184 + $0x78] sm:$0xff]
        %v208 = vld [vmem:[%s184 + $0x80] sm:$0xff]
        %v209 = vld [vmem:[%s184 + $0x88] sm:$0xff]
        %v210 = vld [vmem:[%s184 + $0x90] sm:$0xff]
        %v211 = vld [vmem:[%s184 + $0x98] sm:$0xff]
        %v212 = vld [vmem:[%s184 + $0xa0] sm:$0xff]
        %v213 = vld [vmem:[%s184 + $0xa8] sm:$0xff]
        %v214 = vld [vmem:[%s184 + $0xb0] sm:$0xff]
        %v215 = vld [vmem:[%s184 + $0xb8] sm:$0xff]
        %v216 = vld [vmem:[%s184 + $0xc0] sm:$0xff]
        %v217 = vld [vmem:[%s184 + $0xc8] sm:$0xff]
        %v218 = vld [vmem:[%s184 + $0xd0] sm:$0xff]
        %v219 = vld [vmem:[%s184 + $0xd8] sm:$0xff]
        %v220 = vld [vmem:[%s184 + $0xe0] sm:$0xff]
        %v221 = vld [vmem:[%s184 + $0xe8] sm:$0xff]
        %v222 = vld [vmem:[%s184 + $0xf0] sm:$0xff]
        %v223 = vld [vmem:[%s184 + $0xf8] sm:$0xff]
        %v224 = vand.u32 2147483647, %v192
        %v225 = vand.u32 2147483647, %v193
        %v226 = vand.u32 2147483647, %v194
        %v227 = vand.u32 2147483647, %v195
        %v228 = vand.u32 2147483647, %v196
        %v229 = vand.u32 2147483647, %v197
        %v230 = vand.u32 2147483647, %v198
        %v231 = vand.u32 2147483647, %v199
        %v232 = vand.u32 2147483647, %v200
        %v233 = vand.u32 2147483647, %v201
        %v234 = vand.u32 2147483647, %v202
        %v235 = vand.u32 2147483647, %v203
        %v236 = vand.u32 2147483647, %v204
        %v237 = vand.u32 2147483647, %v205
        %v238 = vand.u32 2147483647, %v206
        %v239 = vand.u32 2147483647, %v207
        %v240 = vand.u32 2147483647, %v208
        %v241 = vand.u32 2147483647, %v209
        %v242 = vand.u32 2147483647, %v210
        %v243 = vand.u32 2147483647, %v211
        %v244 = vand.u32 2147483647, %v212
        %v245 = vand.u32 2147483647, %v213
        %v246 = vand.u32 2147483647, %v214
        %v247 = vand.u32 2147483647, %v215
        %v248 = vand.u32 2147483647, %v216
        %v249 = vand.u32 2147483647, %v217
        %v250 = vand.u32 2147483647, %v218
        %v251 = vand.u32 2147483647, %v219
        %v252 = vand.u32 2147483647, %v220
        %v253 = vand.u32 2147483647, %v221
        %v254 = vand.u32 2147483647, %v222
        %v255 = vand.u32 2147483647, %v223
        %vm256 = vcmask 31744
        %v257 = vsel %vm256, %v224, 0.0
        %258 = vadd.xlane.f32.xlu0 %v257
        %v259 = vpop.xlane.xlu0 %258
        %v260 = vsel %vm256, %v225, 0.0
        %261 = vadd.xlane.f32.xlu0 %v260
        %v262 = vpop.xlane.xlu0 %261
        %v263 = vsel %vm256, %v226, 0.0
        %264 = vadd.xlane.f32.xlu0 %v263
        %v265 = vpop.xlane.xlu0 %264
        %v266 = vsel %vm256, %v227, 0.0
        %267 = vadd.xlane.f32.xlu0 %v266
        %v268 = vpop.xlane.xlu0 %267
        %v269 = vsel %vm256, %v228, 0.0
        %270 = vadd.xlane.f32.xlu0 %v269
        %v271 = vpop.xlane.xlu0 %270
        %v272 = vsel %vm256, %v229, 0.0
        %273 = vadd.xlane.f32.xlu0 %v272
        %v274 = vpop.xlane.xlu0 %273
        %v275 = vsel %vm256, %v230, 0.0
        %276 = vadd.xlane.f32.xlu0 %v275
        %v277 = vpop.xlane.xlu0 %276
        %v278 = vsel %vm256, %v231, 0.0
        %279 = vadd.xlane.f32.xlu0 %v278
        %v280 = vpop.xlane.xlu0 %279
        %v281 = vsel %vm256, %v232, 0.0
        %282 = vadd.xlane.f32.xlu0 %v281
        %v283 = vpop.xlane.xlu0 %282
        %v284 = vsel %vm256, %v233, 0.0
        %285 = vadd.xlane.f32.xlu0 %v284
        %v286 = vpop.xlane.xlu0 %285
        %v287 = vsel %vm256, %v234, 0.0
        %288 = vadd.xlane.f32.xlu0 %v287
        %v289 = vpop.xlane.xlu0 %288
        %v290 = vsel %vm256, %v235, 0.0
        %291 = vadd.xlane.f32.xlu0 %v290
        %v292 = vpop.xlane.xlu0 %291
        %v293 = vsel %vm256, %v236, 0.0
        %294 = vadd.xlane.f32.xlu0 %v293
        %v295 = vpop.xlane.xlu0 %294
        %v296 = vsel %vm256, %v237, 0.0
        %297 = vadd.xlane.f32.xlu0 %v296
        %v298 = vpop.xlane.xlu0 %297
        %v299 = vsel %vm256, %v238, 0.0
        %300 = vadd.xlane.f32.xlu0 %v299
        %v301 = vpop.xlane.xlu0 %300
        %v302 = vsel %vm256, %v239, 0.0
        %303 = vadd.xlane.f32.xlu0 %v302
        %v304 = vpop.xlane.xlu0 %303
        %v305 = vsel %vm256, %v240, 0.0
        %306 = vadd.xlane.f32.xlu0 %v305
        %v307 = vpop.xlane.xlu0 %306
        %v308 = vsel %vm256, %v241, 0.0
        %309 = vadd.xlane.f32.xlu0 %v308
        %v310 = vpop.xlane.xlu0 %309
        %v311 = vsel %vm256, %v242, 0.0
        %312 = vadd.xlane.f32.xlu0 %v311
        %v313 = vpop.xlane.xlu0 %312
        %v314 = vsel %vm256, %v243, 0.0
        %315 = vadd.xlane.f32.xlu0 %v314
        %v316 = vpop.xlane.xlu0 %315
        %v317 = vsel %vm256, %v244, 0.0
        %318 = vadd.xlane.f32.xlu0 %v317
        %v319 = vpop.xlane.xlu0 %318
        %v320 = vsel %vm256, %v245, 0.0
        %321 = vadd.xlane.f32.xlu0 %v320
        %v322 = vpop.xlane.xlu0 %321
        %v323 = vsel %vm256, %v246, 0.0
        %324 = vadd.xlane.f32.xlu0 %v323
        %v325 = vpop.xlane.xlu0 %324
        %v326 = vsel %vm256, %v247, 0.0
        %327 = vadd.xlane.f32.xlu0 %v326
        %v328 = vpop.xlane.xlu0 %327
        %v329 = vsel %vm256, %v248, 0.0
        %330 = vadd.xlane.f32.xlu0 %v329
        %v331 = vpop.xlane.xlu0 %330
        %v332 = vsel %vm256, %v249, 0.0
        %333 = vadd.xlane.f32.xlu0 %v332
        %v334 = vpop.xlane.xlu0 %333
        %v335 = vsel %vm256, %v250, 0.0
        %336 = vadd.xlane.f32.xlu0 %v335
        %v337 = vpop.xlane.xlu0 %336
        %v338 = vsel %vm256, %v251, 0.0
        %339 = vadd.xlane.f32.xlu0 %v338
        %v340 = vpop.xlane.xlu0 %339
        %v341 = vsel %vm256, %v252, 0.0
        %342 = vadd.xlane.f32.xlu0 %v341
        %v343 = vpop.xlane.xlu0 %342
        %v344 = vsel %vm256, %v253, 0.0
        %345 = vadd.xlane.f32.xlu0 %v344
        %v346 = vpop.xlane.xlu0 %345
        %v347 = vsel %vm256, %v254, 0.0
        %348 = vadd.xlane.f32.xlu0 %v347
        %v349 = vpop.xlane.xlu0 %348
        %v350 = vsel %vm256, %v255, 0.0
        %351 = vadd.xlane.f32.xlu0 %v350
        %v352 = vpop.xlane.xlu0 %351
        %v353 = vmax.f32 %v259, 1e-12
        %v354 = vmax.f32 %v262, 1e-12
        %v355 = vmax.f32 %v265, 1e-12
        %v356 = vmax.f32 %v268, 1e-12
        %v357 = vmax.f32 %v271, 1e-12
        %v358 = vmax.f32 %v274, 1e-12
        %v359 = vmax.f32 %v277, 1e-12
        %v360 = vmax.f32 %v280, 1e-12
        %v361 = vmax.f32 %v283, 1e-12
        %v362 = vmax.f32 %v286, 1e-12
        %v363 = vmax.f32 %v289, 1e-12
        %v364 = vmax.f32 %v292, 1e-12
        %v365 = vmax.f32 %v295, 1e-12
        %v366 = vmax.f32 %v298, 1e-12
        %v367 = vmax.f32 %v301, 1e-12
        %v368 = vmax.f32 %v304, 1e-12
        %v369 = vmax.f32 %v307, 1e-12
        %v370 = vmax.f32 %v310, 1e-12
        %v371 = vmax.f32 %v313, 1e-12
        %v372 = vmax.f32 %v316, 1e-12
        %v373 = vmax.f32 %v319, 1e-12
        %v374 = vmax.f32 %v322, 1e-12
        %v375 = vmax.f32 %v325, 1e-12
        %v376 = vmax.f32 %v328, 1e-12
        %v377 = vmax.f32 %v331, 1e-12
        %v378 = vmax.f32 %v334, 1e-12
        %v379 = vmax.f32 %v337, 1e-12
        %v380 = vmax.f32 %v340, 1e-12
        %v381 = vmax.f32 %v343, 1e-12
        %v382 = vmax.f32 %v346, 1e-12
        %v383 = vmax.f32 %v349, 1e-12
        %v384 = vmax.f32 %v352, 1e-12
        %v385 = vrcp.pop %v353
        %v386 = vmul.f32 %v353, %v385
        %v387 = vsub.f32 1.0, %v386
        %v388 = vmul.f32 %v385, %v387
        %v389 = vadd.f32 %v385, %v388
        %vm390 = vweird.f32 %v353
        %vm391 = vweird.f32 %v385
        %vm392 = vmor %vm390, %vm391
        %v393 = vsel %vm392, %v385, %v389
        %v394 = vand.u32 2147483647, %v353
        %vm395 = vcmp.eq.f32.partialorder %v394, 8.507059e+37
        %v396 = vand.u32 %v353, 2147483648
        %v397 = vor.u32 1.1754944e-38, %v396
        %v398 = vsel %vm395, %v397, %v393
        %v399 = vmul.f32 %v192, %v398
        %v400 = vrcp.pop %v354
        %v401 = vmul.f32 %v354, %v400
        %v402 = vsub.f32 1.0, %v401
        %v403 = vmul.f32 %v400, %v402
        %v404 = vadd.f32 %v400, %v403
        %vm405 = vweird.f32 %v354
        %vm406 = vweird.f32 %v400
        %vm407 = vmor %vm405, %vm406
        %v408 = vsel %vm407, %v400, %v404
        %v409 = vand.u32 2147483647, %v354
        %vm410 = vcmp.eq.f32.partialorder %v409, 8.507059e+37
        %v411 = vand.u32 %v354, 2147483648
        %v412 = vor.u32 1.1754944e-38, %v411
        %v413 = vsel %vm410, %v412, %v408
        %v414 = vmul.f32 %v193, %v413
        %v415 = vrcp.pop %v355
        %v416 = vmul.f32 %v355, %v415
        %v417 = vsub.f32 1.0, %v416
        %v418 = vmul.f32 %v415, %v417
        %v419 = vadd.f32 %v415, %v418
        %vm420 = vweird.f32 %v355
        %vm421 = vweird.f32 %v415
        %vm422 = vmor %vm420, %vm421
        %v423 = vsel %vm422, %v415, %v419
        %v424 = vand.u32 2147483647, %v355
        %vm425 = vcmp.eq.f32.partialorder %v424, 8.507059e+37
        %v426 = vand.u32 %v355, 2147483648
        %v427 = vor.u32 1.1754944e-38, %v426
        %v428 = vsel %vm425, %v427, %v423
        %v429 = vmul.f32 %v194, %v428
        %v430 = vrcp.pop %v356
        %v431 = vmul.f32 %v356, %v430
        %v432 = vsub.f32 1.0, %v431
        %v433 = vmul.f32 %v430, %v432
        %v434 = vadd.f32 %v430, %v433
        %vm435 = vweird.f32 %v356
        %vm436 = vweird.f32 %v430
        %vm437 = vmor %vm435, %vm436
        %v438 = vsel %vm437, %v430, %v434
        %v439 = vand.u32 2147483647, %v356
        %vm440 = vcmp.eq.f32.partialorder %v439, 8.507059e+37
        %v441 = vand.u32 %v356, 2147483648
        %v442 = vor.u32 1.1754944e-38, %v441
        %v443 = vsel %vm440, %v442, %v438
        %v444 = vmul.f32 %v195, %v443
        %v445 = vrcp.pop %v357
        %v446 = vmul.f32 %v357, %v445
        %v447 = vsub.f32 1.0, %v446
        %v448 = vmul.f32 %v445, %v447
        %v449 = vadd.f32 %v445, %v448
        %vm450 = vweird.f32 %v357
        %vm451 = vweird.f32 %v445
        %vm452 = vmor %vm450, %vm451
        %v453 = vsel %vm452, %v445, %v449
        %v454 = vand.u32 2147483647, %v357
        %vm455 = vcmp.eq.f32.partialorder %v454, 8.507059e+37
        %v456 = vand.u32 %v357, 2147483648
        %v457 = vor.u32 1.1754944e-38, %v456
        %v458 = vsel %vm455, %v457, %v453
        %v459 = vmul.f32 %v196, %v458
        %v460 = vrcp.pop %v358
        %v461 = vmul.f32 %v358, %v460
        %v462 = vsub.f32 1.0, %v461
        %v463 = vmul.f32 %v460, %v462
        %v464 = vadd.f32 %v460, %v463
        %vm465 = vweird.f32 %v358
        %vm466 = vweird.f32 %v460
        %vm467 = vmor %vm465, %vm466
        %v468 = vsel %vm467, %v460, %v464
        %v469 = vand.u32 2147483647, %v358
        %vm470 = vcmp.eq.f32.partialorder %v469, 8.507059e+37
        %v471 = vand.u32 %v358, 2147483648
        %v472 = vor.u32 1.1754944e-38, %v471
        %v473 = vsel %vm470, %v472, %v468
        %v474 = vmul.f32 %v197, %v473
        %v475 = vrcp.pop %v359
        %v476 = vmul.f32 %v359, %v475
        %v477 = vsub.f32 1.0, %v476
        %v478 = vmul.f32 %v475, %v477
        %v479 = vadd.f32 %v475, %v478
        %vm480 = vweird.f32 %v359
        %vm481 = vweird.f32 %v475
        %vm482 = vmor %vm480, %vm481
        %v483 = vsel %vm482, %v475, %v479
        %v484 = vand.u32 2147483647, %v359
        %vm485 = vcmp.eq.f32.partialorder %v484, 8.507059e+37
        %v486 = vand.u32 %v359, 2147483648
        %v487 = vor.u32 1.1754944e-38, %v486
        %v488 = vsel %vm485, %v487, %v483
        %v489 = vmul.f32 %v198, %v488
        %v490 = vrcp.pop %v360
        %v491 = vmul.f32 %v360, %v490
        %v492 = vsub.f32 1.0, %v491
        %v493 = vmul.f32 %v490, %v492
        %v494 = vadd.f32 %v490, %v493
        %vm495 = vweird.f32 %v360
        %vm496 = vweird.f32 %v490
        %vm497 = vmor %vm495, %vm496
        %v498 = vsel %vm497, %v490, %v494
        %v499 = vand.u32 2147483647, %v360
        %vm500 = vcmp.eq.f32.partialorder %v499, 8.507059e+37
        %v501 = vand.u32 %v360, 2147483648
        %v502 = vor.u32 1.1754944e-38, %v501
        %v503 = vsel %vm500, %v502, %v498
        %v504 = vmul.f32 %v199, %v503
        %v505 = vrcp.pop %v361
        %v506 = vmul.f32 %v361, %v505
        %v507 = vsub.f32 1.0, %v506
        %v508 = vmul.f32 %v505, %v507
        %v509 = vadd.f32 %v505, %v508
        %vm510 = vweird.f32 %v361
        %vm511 = vweird.f32 %v505
        %vm512 = vmor %vm510, %vm511
        %v513 = vsel %vm512, %v505, %v509
        %v514 = vand.u32 2147483647, %v361
        %vm515 = vcmp.eq.f32.partialorder %v514, 8.507059e+37
        %v516 = vand.u32 %v361, 2147483648
        %v517 = vor.u32 1.1754944e-38, %v516
        %v518 = vsel %vm515, %v517, %v513
        %v519 = vmul.f32 %v200, %v518
        %v520 = vrcp.pop %v362
        %v521 = vmul.f32 %v362, %v520
        %v522 = vsub.f32 1.0, %v521
        %v523 = vmul.f32 %v520, %v522
        %v524 = vadd.f32 %v520, %v523
        %vm525 = vweird.f32 %v362
        %vm526 = vweird.f32 %v520
        %vm527 = vmor %vm525, %vm526
        %v528 = vsel %vm527, %v520, %v524
        %v529 = vand.u32 2147483647, %v362
        %vm530 = vcmp.eq.f32.partialorder %v529, 8.507059e+37
        %v531 = vand.u32 %v362, 2147483648
        %v532 = vor.u32 1.1754944e-38, %v531
        %v533 = vsel %vm530, %v532, %v528
        %v534 = vmul.f32 %v201, %v533
        %v535 = vrcp.pop %v363
        %v536 = vmul.f32 %v363, %v535
        %v537 = vsub.f32 1.0, %v536
        %v538 = vmul.f32 %v535, %v537
        %v539 = vadd.f32 %v535, %v538
        %vm540 = vweird.f32 %v363
        %vm541 = vweird.f32 %v535
        %vm542 = vmor %vm540, %vm541
        %v543 = vsel %vm542, %v535, %v539
        %v544 = vand.u32 2147483647, %v363
        %vm545 = vcmp.eq.f32.partialorder %v544, 8.507059e+37
        %v546 = vand.u32 %v363, 2147483648
        %v547 = vor.u32 1.1754944e-38, %v546
        %v548 = vsel %vm545, %v547, %v543
        %v549 = vmul.f32 %v202, %v548
        %v550 = vrcp.pop %v364
        %v551 = vmul.f32 %v364, %v550
        %v552 = vsub.f32 1.0, %v551
        %v553 = vmul.f32 %v550, %v552
        %v554 = vadd.f32 %v550, %v553
        %vm555 = vweird.f32 %v364
        %vm556 = vweird.f32 %v550
        %vm557 = vmor %vm555, %vm556
        %v558 = vsel %vm557, %v550, %v554
        %v559 = vand.u32 2147483647, %v364
        %vm560 = vcmp.eq.f32.partialorder %v559, 8.507059e+37
        %v561 = vand.u32 %v364, 2147483648
        %v562 = vor.u32 1.1754944e-38, %v561
        %v563 = vsel %vm560, %v562, %v558
        %v564 = vmul.f32 %v203, %v563
        %v565 = vrcp.pop %v365
        %v566 = vmul.f32 %v365, %v565
        %v567 = vsub.f32 1.0, %v566
        %v568 = vmul.f32 %v565, %v567
        %v569 = vadd.f32 %v565, %v568
        %vm570 = vweird.f32 %v365
        %vm571 = vweird.f32 %v565
        %vm572 = vmor %vm570, %vm571
        %v573 = vsel %vm572, %v565, %v569
        %v574 = vand.u32 2147483647, %v365
        %vm575 = vcmp.eq.f32.partialorder %v574, 8.507059e+37
        %v576 = vand.u32 %v365, 2147483648
        %v577 = vor.u32 1.1754944e-38, %v576
        %v578 = vsel %vm575, %v577, %v573
        %v579 = vmul.f32 %v204, %v578
        %v580 = vrcp.pop %v366
        %v581 = vmul.f32 %v366, %v580
        %v582 = vsub.f32 1.0, %v581
        %v583 = vmul.f32 %v580, %v582
        %v584 = vadd.f32 %v580, %v583
        %vm585 = vweird.f32 %v366
        %vm586 = vweird.f32 %v580
        %vm587 = vmor %vm585, %vm586
        %v588 = vsel %vm587, %v580, %v584
        %v589 = vand.u32 2147483647, %v366
        %vm590 = vcmp.eq.f32.partialorder %v589, 8.507059e+37
        %v591 = vand.u32 %v366, 2147483648
        %v592 = vor.u32 1.1754944e-38, %v591
        %v593 = vsel %vm590, %v592, %v588
        %v594 = vmul.f32 %v205, %v593
        %v595 = vrcp.pop %v367
        %v596 = vmul.f32 %v367, %v595
        %v597 = vsub.f32 1.0, %v596
        %v598 = vmul.f32 %v595, %v597
        %v599 = vadd.f32 %v595, %v598
        %vm600 = vweird.f32 %v367
        %vm601 = vweird.f32 %v595
        %vm602 = vmor %vm600, %vm601
        %v603 = vsel %vm602, %v595, %v599
        %v604 = vand.u32 2147483647, %v367
        %vm605 = vcmp.eq.f32.partialorder %v604, 8.507059e+37
        %v606 = vand.u32 %v367, 2147483648
        %v607 = vor.u32 1.1754944e-38, %v606
        %v608 = vsel %vm605, %v607, %v603
        %v609 = vmul.f32 %v206, %v608
        %v610 = vrcp.pop %v368
        %v611 = vmul.f32 %v368, %v610
        %v612 = vsub.f32 1.0, %v611
        %v613 = vmul.f32 %v610, %v612
        %v614 = vadd.f32 %v610, %v613
        %vm615 = vweird.f32 %v368
        %vm616 = vweird.f32 %v610
        %vm617 = vmor %vm615, %vm616
        %v618 = vsel %vm617, %v610, %v614
        %v619 = vand.u32 2147483647, %v368
        %vm620 = vcmp.eq.f32.partialorder %v619, 8.507059e+37
        %v621 = vand.u32 %v368, 2147483648
        %v622 = vor.u32 1.1754944e-38, %v621
        %v623 = vsel %vm620, %v622, %v618
        %v624 = vmul.f32 %v207, %v623
        %v625 = vrcp.pop %v369
        %v626 = vmul.f32 %v369, %v625
        %v627 = vsub.f32 1.0, %v626
        %v628 = vmul.f32 %v625, %v627
        %v629 = vadd.f32 %v625, %v628
        %vm630 = vweird.f32 %v369
        %vm631 = vweird.f32 %v625
        %vm632 = vmor %vm630, %vm631
        %v633 = vsel %vm632, %v625, %v629
        %v634 = vand.u32 2147483647, %v369
        %vm635 = vcmp.eq.f32.partialorder %v634, 8.507059e+37
        %v636 = vand.u32 %v369, 2147483648
        %v637 = vor.u32 1.1754944e-38, %v636
        %v638 = vsel %vm635, %v637, %v633
        %v639 = vmul.f32 %v208, %v638
        %v640 = vrcp.pop %v370
        %v641 = vmul.f32 %v370, %v640
        %v642 = vsub.f32 1.0, %v641
        %v643 = vmul.f32 %v640, %v642
        %v644 = vadd.f32 %v640, %v643
        %vm645 = vweird.f32 %v370
        %vm646 = vweird.f32 %v640
        %vm647 = vmor %vm645, %vm646
        %v648 = vsel %vm647, %v640, %v644
        %v649 = vand.u32 2147483647, %v370
        %vm650 = vcmp.eq.f32.partialorder %v649, 8.507059e+37
        %v651 = vand.u32 %v370, 2147483648
        %v652 = vor.u32 1.1754944e-38, %v651
        %v653 = vsel %vm650, %v652, %v648
        %v654 = vmul.f32 %v209, %v653
        %v655 = vrcp.pop %v371
        %v656 = vmul.f32 %v371, %v655
        %v657 = vsub.f32 1.0, %v656
        %v658 = vmul.f32 %v655, %v657
        %v659 = vadd.f32 %v655, %v658
        %vm660 = vweird.f32 %v371
        %vm661 = vweird.f32 %v655
        %vm662 = vmor %vm660, %vm661
        %v663 = vsel %vm662, %v655, %v659
        %v664 = vand.u32 2147483647, %v371
        %vm665 = vcmp.eq.f32.partialorder %v664, 8.507059e+37
        %v666 = vand.u32 %v371, 2147483648
        %v667 = vor.u32 1.1754944e-38, %v666
        %v668 = vsel %vm665, %v667, %v663
        %v669 = vmul.f32 %v210, %v668
        %v670 = vrcp.pop %v372
        %v671 = vmul.f32 %v372, %v670
        %v672 = vsub.f32 1.0, %v671
        %v673 = vmul.f32 %v670, %v672
        %v674 = vadd.f32 %v670, %v673
        %vm675 = vweird.f32 %v372
        %vm676 = vweird.f32 %v670
        %vm677 = vmor %vm675, %vm676
        %v678 = vsel %vm677, %v670, %v674
        %v679 = vand.u32 2147483647, %v372
        %vm680 = vcmp.eq.f32.partialorder %v679, 8.507059e+37
        %v681 = vand.u32 %v372, 2147483648
        %v682 = vor.u32 1.1754944e-38, %v681
        %v683 = vsel %vm680, %v682, %v678
        %v684 = vmul.f32 %v211, %v683
        %v685 = vrcp.pop %v373
        %v686 = vmul.f32 %v373, %v685
        %v687 = vsub.f32 1.0, %v686
        %v688 = vmul.f32 %v685, %v687
        %v689 = vadd.f32 %v685, %v688
        %vm690 = vweird.f32 %v373
        %vm691 = vweird.f32 %v685
        %vm692 = vmor %vm690, %vm691
        %v693 = vsel %vm692, %v685, %v689
        %v694 = vand.u32 2147483647, %v373
        %vm695 = vcmp.eq.f32.partialorder %v694, 8.507059e+37
        %v696 = vand.u32 %v373, 2147483648
        %v697 = vor.u32 1.1754944e-38, %v696
        %v698 = vsel %vm695, %v697, %v693
        %v699 = vmul.f32 %v212, %v698
        %v700 = vrcp.pop %v374
        %v701 = vmul.f32 %v374, %v700
        %v702 = vsub.f32 1.0, %v701
        %v703 = vmul.f32 %v700, %v702
        %v704 = vadd.f32 %v700, %v703
        %vm705 = vweird.f32 %v374
        %vm706 = vweird.f32 %v700
        %vm707 = vmor %vm705, %vm706
        %v708 = vsel %vm707, %v700, %v704
        %v709 = vand.u32 2147483647, %v374
        %vm710 = vcmp.eq.f32.partialorder %v709, 8.507059e+37
        %v711 = vand.u32 %v374, 2147483648
        %v712 = vor.u32 1.1754944e-38, %v711
        %v713 = vsel %vm710, %v712, %v708
        %v714 = vmul.f32 %v213, %v713
        %v715 = vrcp.pop %v375
        %v716 = vmul.f32 %v375, %v715
        %v717 = vsub.f32 1.0, %v716
        %v718 = vmul.f32 %v715, %v717
        %v719 = vadd.f32 %v715, %v718
        %vm720 = vweird.f32 %v375
        %vm721 = vweird.f32 %v715
        %vm722 = vmor %vm720, %vm721
        %v723 = vsel %vm722, %v715, %v719
        %v724 = vand.u32 2147483647, %v375
        %vm725 = vcmp.eq.f32.partialorder %v724, 8.507059e+37
        %v726 = vand.u32 %v375, 2147483648
        %v727 = vor.u32 1.1754944e-38, %v726
        %v728 = vsel %vm725, %v727, %v723
        %v729 = vmul.f32 %v214, %v728
        %v730 = vrcp.pop %v376
        %v731 = vmul.f32 %v376, %v730
        %v732 = vsub.f32 1.0, %v731
        %v733 = vmul.f32 %v730, %v732
        %v734 = vadd.f32 %v730, %v733
        %vm735 = vweird.f32 %v376
        %vm736 = vweird.f32 %v730
        %vm737 = vmor %vm735, %vm736
        %v738 = vsel %vm737, %v730, %v734
        %v739 = vand.u32 2147483647, %v376
        %vm740 = vcmp.eq.f32.partialorder %v739, 8.507059e+37
        %v741 = vand.u32 %v376, 2147483648
        %v742 = vor.u32 1.1754944e-38, %v741
        %v743 = vsel %vm740, %v742, %v738
        %v744 = vmul.f32 %v215, %v743
        %v745 = vrcp.pop %v377
        %v746 = vmul.f32 %v377, %v745
        %v747 = vsub.f32 1.0, %v746
        %v748 = vmul.f32 %v745, %v747
        %v749 = vadd.f32 %v745, %v748
        %vm750 = vweird.f32 %v377
        %vm751 = vweird.f32 %v745
        %vm752 = vmor %vm750, %vm751
        %v753 = vsel %vm752, %v745, %v749
        %v754 = vand.u32 2147483647, %v377
        %vm755 = vcmp.eq.f32.partialorder %v754, 8.507059e+37
        %v756 = vand.u32 %v377, 2147483648
        %v757 = vor.u32 1.1754944e-38, %v756
        %v758 = vsel %vm755, %v757, %v753
        %v759 = vmul.f32 %v216, %v758
        %v760 = vrcp.pop %v378
        %v761 = vmul.f32 %v378, %v760
        %v762 = vsub.f32 1.0, %v761
        %v763 = vmul.f32 %v760, %v762
        %v764 = vadd.f32 %v760, %v763
        %vm765 = vweird.f32 %v378
        %vm766 = vweird.f32 %v760
        %vm767 = vmor %vm765, %vm766
        %v768 = vsel %vm767, %v760, %v764
        %v769 = vand.u32 2147483647, %v378
        %vm770 = vcmp.eq.f32.partialorder %v769, 8.507059e+37
        %v771 = vand.u32 %v378, 2147483648
        %v772 = vor.u32 1.1754944e-38, %v771
        %v773 = vsel %vm770, %v772, %v768
        %v774 = vmul.f32 %v217, %v773
        %v775 = vrcp.pop %v379
        %v776 = vmul.f32 %v379, %v775
        %v777 = vsub.f32 1.0, %v776
        %v778 = vmul.f32 %v775, %v777
        %v779 = vadd.f32 %v775, %v778
        %vm780 = vweird.f32 %v379
        %vm781 = vweird.f32 %v775
        %vm782 = vmor %vm780, %vm781
        %v783 = vsel %vm782, %v775, %v779
        %v784 = vand.u32 2147483647, %v379
        %vm785 = vcmp.eq.f32.partialorder %v784, 8.507059e+37
        %v786 = vand.u32 %v379, 2147483648
        %v787 = vor.u32 1.1754944e-38, %v786
        %v788 = vsel %vm785, %v787, %v783
        %v789 = vmul.f32 %v218, %v788
        %v790 = vrcp.pop %v380
        %v791 = vmul.f32 %v380, %v790
        %v792 = vsub.f32 1.0, %v791
        %v793 = vmul.f32 %v790, %v792
        %v794 = vadd.f32 %v790, %v793
        %vm795 = vweird.f32 %v380
        %vm796 = vweird.f32 %v790
        %vm797 = vmor %vm795, %vm796
        %v798 = vsel %vm797, %v790, %v794
        %v799 = vand.u32 2147483647, %v380
        %vm800 = vcmp.eq.f32.partialorder %v799, 8.507059e+37
        %v801 = vand.u32 %v380, 2147483648
        %v802 = vor.u32 1.1754944e-38, %v801
        %v803 = vsel %vm800, %v802, %v798
        %v804 = vmul.f32 %v219, %v803
        %v805 = vrcp.pop %v381
        %v806 = vmul.f32 %v381, %v805
        %v807 = vsub.f32 1.0, %v806
        %v808 = vmul.f32 %v805, %v807
        %v809 = vadd.f32 %v805, %v808
        %vm810 = vweird.f32 %v381
        %vm811 = vweird.f32 %v805
        %vm812 = vmor %vm810, %vm811
        %v813 = vsel %vm812, %v805, %v809
        %v814 = vand.u32 2147483647, %v381
        %vm815 = vcmp.eq.f32.partialorder %v814, 8.507059e+37
        %v816 = vand.u32 %v381, 2147483648
        %v817 = vor.u32 1.1754944e-38, %v816
        %v818 = vsel %vm815, %v817, %v813
        %v819 = vmul.f32 %v220, %v818
        %v820 = vrcp.pop %v382
        %v821 = vmul.f32 %v382, %v820
        %v822 = vsub.f32 1.0, %v821
        %v823 = vmul.f32 %v820, %v822
        %v824 = vadd.f32 %v820, %v823
        %vm825 = vweird.f32 %v382
        %vm826 = vweird.f32 %v820
        %vm827 = vmor %vm825, %vm826
        %v828 = vsel %vm827, %v820, %v824
        %v829 = vand.u32 2147483647, %v382
        %vm830 = vcmp.eq.f32.partialorder %v829, 8.507059e+37
        %v831 = vand.u32 %v382, 2147483648
        %v832 = vor.u32 1.1754944e-38, %v831
        %v833 = vsel %vm830, %v832, %v828
        %v834 = vmul.f32 %v221, %v833
        %v835 = vrcp.pop %v383
        %v836 = vmul.f32 %v383, %v835
        %v837 = vsub.f32 1.0, %v836
        %v838 = vmul.f32 %v835, %v837
        %v839 = vadd.f32 %v835, %v838
        %vm840 = vweird.f32 %v383
        %vm841 = vweird.f32 %v835
        %vm842 = vmor %vm840, %vm841
        %v843 = vsel %vm842, %v835, %v839
        %v844 = vand.u32 2147483647, %v383
        %vm845 = vcmp.eq.f32.partialorder %v844, 8.507059e+37
        %v846 = vand.u32 %v383, 2147483648
        %v847 = vor.u32 1.1754944e-38, %v846
        %v848 = vsel %vm845, %v847, %v843
        %v849 = vmul.f32 %v222, %v848
        %v850 = vrcp.pop %v384
        %v851 = vmul.f32 %v384, %v850
        %v852 = vsub.f32 1.0, %v851
        %v853 = vmul.f32 %v850, %v852
        %v854 = vadd.f32 %v850, %v853
        %vm855 = vweird.f32 %v384
        %vm856 = vweird.f32 %v850
        %vm857 = vmor %vm855, %vm856
        %v858 = vsel %vm857, %v850, %v854
        %v859 = vand.u32 2147483647, %v384
        %vm860 = vcmp.eq.f32.partialorder %v859, 8.507059e+37
        %v861 = vand.u32 %v384, 2147483648
        %v862 = vor.u32 1.1754944e-38, %v861
        %v863 = vsel %vm860, %v862, %v858
        %v864 = vmul.f32 %v223, %v863
        %865 = vst.msk [vmem:[#allocation2] sm:$0xff] %vm256, %v399
        %866 = vst.msk [vmem:[#allocation2 + $0x8] sm:$0xff] %vm256, %v414
        %867 = vst.msk [vmem:[#allocation2 + $0x10] sm:$0xff] %vm256, %v429
        %868 = vst.msk [vmem:[#allocation2 + $0x18] sm:$0xff] %vm256, %v444
        %869 = vst.msk [vmem:[#allocation2 + $0x20] sm:$0xff] %vm256, %v459
        %870 = vst.msk [vmem:[#allocation2 + $0x28] sm:$0xff] %vm256, %v474
        %871 = vst.msk [vmem:[#allocation2 + $0x30] sm:$0xff] %vm256, %v489
        %872 = vst.msk [vmem:[#allocation2 + $0x38] sm:$0xff] %vm256, %v504
        %873 = vst.msk [vmem:[#allocation2 + $0x40] sm:$0xff] %vm256, %v519
        %874 = vst.msk [vmem:[#allocation2 + $0x48] sm:$0xff] %vm256, %v534
        %875 = vst.msk [vmem:[#allocation2 + $0x50] sm:$0xff] %vm256, %v549
        %876 = vst.msk [vmem:[#allocation2 + $0x58] sm:$0xff] %vm256, %v564
        %877 = vst.msk [vmem:[#allocation2 + $0x60] sm:$0xff] %vm256, %v579
        %878 = vst.msk [vmem:[#allocation2 + $0x68] sm:$0xff] %vm256, %v594
        %879 = vst.msk [vmem:[#allocation2 + $0x70] sm:$0xff] %vm256, %v609
        %880 = vst.msk [vmem:[#allocation2 + $0x78] sm:$0xff] %vm256, %v624
        %881 = vst.msk [vmem:[#allocation2 + $0x80] sm:$0xff] %vm256, %v639
        %882 = vst.msk [vmem:[#allocation2 + $0x88] sm:$0xff] %vm256, %v654
        %883 = vst.msk [vmem:[#allocation2 + $0x90] sm:$0xff] %vm256, %v669
        %884 = vst.msk [vmem:[#allocation2 + $0x98] sm:$0xff] %vm256, %v684
        %885 = vst.msk [vmem:[#allocation2 + $0xa0] sm:$0xff] %vm256, %v699
        %886 = vst.msk [vmem:[#allocation2 + $0xa8] sm:$0xff] %vm256, %v714
        %887 = vst.msk [vmem:[#allocation2 + $0xb0] sm:$0xff] %vm256, %v729
        %888 = vst.msk [vmem:[#allocation2 + $0xb8] sm:$0xff] %vm256, %v744
        %889 = vst.msk [vmem:[#allocation2 + $0xc0] sm:$0xff] %vm256, %v759
        %890 = vst.msk [vmem:[#allocation2 + $0xc8] sm:$0xff] %vm256, %v774
        %891 = vst.msk [vmem:[#allocation2 + $0xd0] sm:$0xff] %vm256, %v789
        %892 = vst.msk [vmem:[#allocation2 + $0xd8] sm:$0xff] %vm256, %v804
        %893 = vst.msk [vmem:[#allocation2 + $0xe0] sm:$0xff] %vm256, %v819
        %894 = vst.msk [vmem:[#allocation2 + $0xe8] sm:$0xff] %vm256, %v834
        %895 = vst.msk [vmem:[#allocation2 + $0xf0] sm:$0xff] %vm256, %v849
        %896 = vst.msk [vmem:[#allocation2 + $0xf8] sm:$0xff] %vm256, %v864
        %vm897 = vcmask 0
        %898 = vst.msk [vmem:[#allocation3] sm:$0x1] %vm897, 0.0
      $region32: #{tpu_custom_call.1} parent=27 // pred_fallthru
        _
      %v899 = vld [vmem:[%s178] sm:$0xff]
      %v900 = vld [vmem:[%s178 + $0x8] sm:$0xff]
      %v901 = vld [vmem:[%s178 + $0x10] sm:$0xff]
      %v902 = vld [vmem:[%s178 + $0x18] sm:$0xff]
      %v903 = vld [vmem:[%s178 + $0x20] sm:$0xff]
      %v904 = vld [vmem:[%s178 + $0x28] sm:$0xff]
      %v905 = vld [vmem:[%s178 + $0x30] sm:$0xff]
      %v906 = vld [vmem:[%s178 + $0x38] sm:$0xff]
      %v907 = vld [vmem:[%s178 + $0x40] sm:$0xff]
      %v908 = vld [vmem:[%s178 + $0x48] sm:$0xff]
      %v909 = vld [vmem:[%s178 + $0x50] sm:$0xff]
      %v910 = vld [vmem:[%s178 + $0x58] sm:$0xff]
      %v911 = vld [vmem:[%s178 + $0x60] sm:$0xff]
      %v912 = vld [vmem:[%s178 + $0x68] sm:$0xff]
      %v913 = vld [vmem:[%s178 + $0x70] sm:$0xff]
      %v914 = vld [vmem:[%s178 + $0x78] sm:$0xff]
      %v915 = vld [vmem:[%s178 + $0x80] sm:$0xff]
      %v916 = vld [vmem:[%s178 + $0x88] sm:$0xff]
      %v917 = vld [vmem:[%s178 + $0x90] sm:$0xff]
      %v918 = vld [vmem:[%s178 + $0x98] sm:$0xff]
      %v919 = vld [vmem:[%s178 + $0xa0] sm:$0xff]
      %v920 = vld [vmem:[%s178 + $0xa8] sm:$0xff]
      %v921 = vld [vmem:[%s178 + $0xb0] sm:$0xff]
      %v922 = vld [vmem:[%s178 + $0xb8] sm:$0xff]
      %v923 = vld [vmem:[%s178 + $0xc0] sm:$0xff]
      %v924 = vld [vmem:[%s178 + $0xc8] sm:$0xff]
      %v925 = vld [vmem:[%s178 + $0xd0] sm:$0xff]
      %v926 = vld [vmem:[%s178 + $0xd8] sm:$0xff]
      %v927 = vld [vmem:[%s178 + $0xe0] sm:$0xff]
      %v928 = vld [vmem:[%s178 + $0xe8] sm:$0xff]
      %v929 = vld [vmem:[%s178 + $0xf0] sm:$0xff]
      %v930 = vld [vmem:[%s178 + $0xf8] sm:$0xff]
      %v931 = vand.u32 2147483647, %v899
      %v932 = vand.u32 2147483647, %v900
      %v933 = vand.u32 2147483647, %v901
      %v934 = vand.u32 2147483647, %v902
      %v935 = vand.u32 2147483647, %v903
      %v936 = vand.u32 2147483647, %v904
      %v937 = vand.u32 2147483647, %v905
      %v938 = vand.u32 2147483647, %v906
      %v939 = vand.u32 2147483647, %v907
      %v940 = vand.u32 2147483647, %v908
      %v941 = vand.u32 2147483647, %v909
      %v942 = vand.u32 2147483647, %v910
      %v943 = vand.u32 2147483647, %v911
      %v944 = vand.u32 2147483647, %v912
      %v945 = vand.u32 2147483647, %v913
      %v946 = vand.u32 2147483647, %v914
      %v947 = vand.u32 2147483647, %v915
      %v948 = vand.u32 2147483647, %v916
      %v949 = vand.u32 2147483647, %v917
      %v950 = vand.u32 2147483647, %v918
      %v951 = vand.u32 2147483647, %v919
      %v952 = vand.u32 2147483647, %v920
      %v953 = vand.u32 2147483647, %v921
      %v954 = vand.u32 2147483647, %v922
      %v955 = vand.u32 2147483647, %v923
      %v956 = vand.u32 2147483647, %v924
      %v957 = vand.u32 2147483647, %v925
      %v958 = vand.u32 2147483647, %v926
      %v959 = vand.u32 2147483647, %v927
      %v960 = vand.u32 2147483647, %v928
      %v961 = vand.u32 2147483647, %v929
      %v962 = vand.u32 2147483647, %v930
      %vm963 = vcmask 31744
      %v964 = vsel %vm963, %v931, 0.0
      %965 = vadd.xlane.f32.xlu0 %v964
      %v966 = vpop.xlane.xlu0 %965
      %v967 = vsel %vm963, %v932, 0.0
      %968 = vadd.xlane.f32.xlu0 %v967
      %v969 = vpop.xlane.xlu0 %968
      %v970 = vsel %vm963, %v933, 0.0
      %971 = vadd.xlane.f32.xlu0 %v970
      %v972 = vpop.xlane.xlu0 %971
      %v973 = vsel %vm963, %v934, 0.0
      %974 = vadd.xlane.f32.xlu0 %v973
      %v975 = vpop.xlane.xlu0 %974
      %v976 = vsel %vm963, %v935, 0.0
      %977 = vadd.xlane.f32.xlu0 %v976
      %v978 = vpop.xlane.xlu0 %977
      %v979 = vsel %vm963, %v936, 0.0
      %980 = vadd.xlane.f32.xlu0 %v979
      %v981 = vpop.xlane.xlu0 %980
      %v982 = vsel %vm963, %v937, 0.0
      %983 = vadd.xlane.f32.xlu0 %v982
      %v984 = vpop.xlane.xlu0 %983
      %v985 = vsel %vm963, %v938, 0.0
      %986 = vadd.xlane.f32.xlu0 %v985
      %v987 = vpop.xlane.xlu0 %986
      %v988 = vsel %vm963, %v939, 0.0
      %989 = vadd.xlane.f32.xlu0 %v988
      %v990 = vpop.xlane.xlu0 %989
      %v991 = vsel %vm963, %v940, 0.0
      %992 = vadd.xlane.f32.xlu0 %v991
      %v993 = vpop.xlane.xlu0 %992
      %v994 = vsel %vm963, %v941, 0.0
      %995 = vadd.xlane.f32.xlu0 %v994
      %v996 = vpop.xlane.xlu0 %995
      %v997 = vsel %vm963, %v942, 0.0
      %998 = vadd.xlane.f32.xlu0 %v997
      %v999 = vpop.xlane.xlu0 %998
      %v1000 = vsel %vm963, %v943, 0.0
      %1001 = vadd.xlane.f32.xlu0 %v1000
      %v1002 = vpop.xlane.xlu0 %1001
      %v1003 = vsel %vm963, %v944, 0.0
      %1004 = vadd.xlane.f32.xlu0 %v1003
      %v1005 = vpop.xlane.xlu0 %1004
      %v1006 = vsel %vm963, %v945, 0.0
      %1007 = vadd.xlane.f32.xlu0 %v1006
      %v1008 = vpop.xlane.xlu0 %1007
      %v1009 = vsel %vm963, %v946, 0.0
      %1010 = vadd.xlane.f32.xlu0 %v1009
      %v1011 = vpop.xlane.xlu0 %1010
      %v1012 = vsel %vm963, %v947, 0.0
      %1013 = vadd.xlane.f32.xlu0 %v1012
      %v1014 = vpop.xlane.xlu0 %1013
      %v1015 = vsel %vm963, %v948, 0.0
      %1016 = vadd.xlane.f32.xlu0 %v1015
      %v1017 = vpop.xlane.xlu0 %1016
      %v1018 = vsel %vm963, %v949, 0.0
      %1019 = vadd.xlane.f32.xlu0 %v1018
      %v1020 = vpop.xlane.xlu0 %1019
      %v1021 = vsel %vm963, %v950, 0.0
      %1022 = vadd.xlane.f32.xlu0 %v1021
      %v1023 = vpop.xlane.xlu0 %1022
      %v1024 = vsel %vm963, %v951, 0.0
      %1025 = vadd.xlane.f32.xlu0 %v1024
      %v1026 = vpop.xlane.xlu0 %1025
      %v1027 = vsel %vm963, %v952, 0.0
      %1028 = vadd.xlane.f32.xlu0 %v1027
      %v1029 = vpop.xlane.xlu0 %1028
      %v1030 = vsel %vm963, %v953, 0.0
      %1031 = vadd.xlane.f32.xlu0 %v1030
      %v1032 = vpop.xlane.xlu0 %1031
      %v1033 = vsel %vm963, %v954, 0.0
      %1034 = vadd.xlane.f32.xlu0 %v1033
      %v1035 = vpop.xlane.xlu0 %1034
      %v1036 = vsel %vm963, %v955, 0.0
      %1037 = vadd.xlane.f32.xlu0 %v1036
      %v1038 = vpop.xlane.xlu0 %1037
      %v1039 = vsel %vm963, %v956, 0.0
      %1040 = vadd.xlane.f32.xlu0 %v1039
      %v1041 = vpop.xlane.xlu0 %1040
      %v1042 = vsel %vm963, %v957, 0.0
      %1043 = vadd.xlane.f32.xlu0 %v1042
      %v1044 = vpop.xlane.xlu0 %1043
      %v1045 = vsel %vm963, %v958, 0.0
      %1046 = vadd.xlane.f32.xlu0 %v1045
      %v1047 = vpop.xlane.xlu0 %1046
      %v1048 = vsel %vm963, %v959, 0.0
      %1049 = vadd.xlane.f32.xlu0 %v1048
      %v1050 = vpop.xlane.xlu0 %1049
      %v1051 = vsel %vm963, %v960, 0.0
      %1052 = vadd.xlane.f32.xlu0 %v1051
      %v1053 = vpop.xlane.xlu0 %1052
      %v1054 = vsel %vm963, %v961, 0.0
      %1055 = vadd.xlane.f32.xlu0 %v1054
      %v1056 = vpop.xlane.xlu0 %1055
      %v1057 = vsel %vm963, %v962, 0.0
      %1058 = vadd.xlane.f32.xlu0 %v1057
      %v1059 = vpop.xlane.xlu0 %1058
      %v1060 = vmax.f32 %v966, 1e-12
      %v1061 = vmax.f32 %v969, 1e-12
      %v1062 = vmax.f32 %v972, 1e-12
      %v1063 = vmax.f32 %v975, 1e-12
      %v1064 = vmax.f32 %v978, 1e-12
      %v1065 = vmax.f32 %v981, 1e-12
      %v1066 = vmax.f32 %v984, 1e-12
      %v1067 = vmax.f32 %v987, 1e-12
      %v1068 = vmax.f32 %v990, 1e-12
      %v1069 = vmax.f32 %v993, 1e-12
      %v1070 = vmax.f32 %v996, 1e-12
      %v1071 = vmax.f32 %v999, 1e-12
      %v1072 = vmax.f32 %v1002, 1e-12
      %v1073 = vmax.f32 %v1005, 1e-12
      %v1074 = vmax.f32 %v1008, 1e-12
      %v1075 = vmax.f32 %v1011, 1e-12
      %v1076 = vmax.f32 %v1014, 1e-12
      %v1077 = vmax.f32 %v1017, 1e-12
      %v1078 = vmax.f32 %v1020, 1e-12
      %v1079 = vmax.f32 %v1023, 1e-12
      %v1080 = vmax.f32 %v1026, 1e-12
      %v1081 = vmax.f32 %v1029, 1e-12
      %v1082 = vmax.f32 %v1032, 1e-12
      %v1083 = vmax.f32 %v1035, 1e-12
      %v1084 = vmax.f32 %v1038, 1e-12
      %v1085 = vmax.f32 %v1041, 1e-12
      %v1086 = vmax.f32 %v1044, 1e-12
      %v1087 = vmax.f32 %v1047, 1e-12
      %v1088 = vmax.f32 %v1050, 1e-12
      %v1089 = vmax.f32 %v1053, 1e-12
      %v1090 = vmax.f32 %v1056, 1e-12
      %v1091 = vmax.f32 %v1059, 1e-12
      %v1092 = vrcp.pop %v1060
      %v1093 = vmul.f32 %v1060, %v1092
      %v1094 = vsub.f32 1.0, %v1093
      %v1095 = vmul.f32 %v1092, %v1094
      %v1096 = vadd.f32 %v1092, %v1095
      %vm1097 = vweird.f32 %v1060
      %vm1098 = vweird.f32 %v1092
      %vm1099 = vmor %vm1097, %vm1098
      %v1100 = vsel %vm1099, %v1092, %v1096
      %v1101 = vand.u32 2147483647, %v1060
      %vm1102 = vcmp.eq.f32.partialorder %v1101, 8.507059e+37
      %v1103 = vand.u32 %v1060, 2147483648
      %v1104 = vor.u32 1.1754944e-38, %v1103
      %v1105 = vsel %vm1102, %v1104, %v1100
      %v1106 = vmul.f32 14.285714, %v1105
      %v1107 = vrcp.pop %v1061
      %v1108 = vmul.f32 %v1061, %v1107
      %v1109 = vsub.f32 1.0, %v1108
      %v1110 = vmul.f32 %v1107, %v1109
      %v1111 = vadd.f32 %v1107, %v1110
      %vm1112 = vweird.f32 %v1061
      %vm1113 = vweird.f32 %v1107
      %vm1114 = vmor %vm1112, %vm1113
      %v1115 = vsel %vm1114, %v1107, %v1111
      %v1116 = vand.u32 2147483647, %v1061
      %vm1117 = vcmp.eq.f32.partialorder %v1116, 8.507059e+37
      %v1118 = vand.u32 %v1061, 2147483648
      %v1119 = vor.u32 1.1754944e-38, %v1118
      %v1120 = vsel %vm1117, %v1119, %v1115
      %v1121 = vmul.f32 14.285714, %v1120
      %v1122 = vrcp.pop %v1062
      %v1123 = vmul.f32 %v1062, %v1122
      %v1124 = vsub.f32 1.0, %v1123
      %v1125 = vmul.f32 %v1122, %v1124
      %v1126 = vadd.f32 %v1122, %v1125
      %vm1127 = vweird.f32 %v1062
      %vm1128 = vweird.f32 %v1122
      %vm1129 = vmor %vm1127, %vm1128
      %v1130 = vsel %vm1129, %v1122, %v1126
      %v1131 = vand.u32 2147483647, %v1062
      %vm1132 = vcmp.eq.f32.partialorder %v1131, 8.507059e+37
      %v1133 = vand.u32 %v1062, 2147483648
      %v1134 = vor.u32 1.1754944e-38, %v1133
      %v1135 = vsel %vm1132, %v1134, %v1130
      %v1136 = vmul.f32 14.285714, %v1135
      %v1137 = vrcp.pop %v1063
      %v1138 = vmul.f32 %v1063, %v1137
      %v1139 = vsub.f32 1.0, %v1138
      %v1140 = vmul.f32 %v1137, %v1139
      %v1141 = vadd.f32 %v1137, %v1140
      %vm1142 = vweird.f32 %v1063
      %vm1143 = vweird.f32 %v1137
      %vm1144 = vmor %vm1142, %vm1143
      %v1145 = vsel %vm1144, %v1137, %v1141
      %v1146 = vand.u32 2147483647, %v1063
      %vm1147 = vcmp.eq.f32.partialorder %v1146, 8.507059e+37
      %v1148 = vand.u32 %v1063, 2147483648
      %v1149 = vor.u32 1.1754944e-38, %v1148
      %v1150 = vsel %vm1147, %v1149, %v1145
      %v1151 = vmul.f32 14.285714, %v1150
      %v1152 = vrcp.pop %v1064
      %v1153 = vmul.f32 %v1064, %v1152
      %v1154 = vsub.f32 1.0, %v1153
      %v1155 = vmul.f32 %v1152, %v1154
      %v1156 = vadd.f32 %v1152, %v1155
      %vm1157 = vweird.f32 %v1064
      %vm1158 = vweird.f32 %v1152
      %vm1159 = vmor %vm1157, %vm1158
      %v1160 = vsel %vm1159, %v1152, %v1156
      %v1161 = vand.u32 2147483647, %v1064
      %vm1162 = vcmp.eq.f32.partialorder %v1161, 8.507059e+37
      %v1163 = vand.u32 %v1064, 2147483648
      %v1164 = vor.u32 1.1754944e-38, %v1163
      %v1165 = vsel %vm1162, %v1164, %v1160
      %v1166 = vmul.f32 14.285714, %v1165
      %v1167 = vrcp.pop %v1065
      %v1168 = vmul.f32 %v1065, %v1167
      %v1169 = vsub.f32 1.0, %v1168
      %v1170 = vmul.f32 %v1167, %v1169
      %v1171 = vadd.f32 %v1167, %v1170
      %vm1172 = vweird.f32 %v1065
      %vm1173 = vweird.f32 %v1167
      %vm1174 = vmor %vm1172, %vm1173
      %v1175 = vsel %vm1174, %v1167, %v1171
      %v1176 = vand.u32 2147483647, %v1065
      %vm1177 = vcmp.eq.f32.partialorder %v1176, 8.507059e+37
      %v1178 = vand.u32 %v1065, 2147483648
      %v1179 = vor.u32 1.1754944e-38, %v1178
      %v1180 = vsel %vm1177, %v1179, %v1175
      %v1181 = vmul.f32 14.285714, %v1180
      %v1182 = vrcp.pop %v1066
      %v1183 = vmul.f32 %v1066, %v1182
      %v1184 = vsub.f32 1.0, %v1183
      %v1185 = vmul.f32 %v1182, %v1184
      %v1186 = vadd.f32 %v1182, %v1185
      %vm1187 = vweird.f32 %v1066
      %vm1188 = vweird.f32 %v1182
      %vm1189 = vmor %vm1187, %vm1188
      %v1190 = vsel %vm1189, %v1182, %v1186
      %v1191 = vand.u32 2147483647, %v1066
      %vm1192 = vcmp.eq.f32.partialorder %v1191, 8.507059e+37
      %v1193 = vand.u32 %v1066, 2147483648
      %v1194 = vor.u32 1.1754944e-38, %v1193
      %v1195 = vsel %vm1192, %v1194, %v1190
      %v1196 = vmul.f32 14.285714, %v1195
      %v1197 = vrcp.pop %v1067
      %v1198 = vmul.f32 %v1067, %v1197
      %v1199 = vsub.f32 1.0, %v1198
      %v1200 = vmul.f32 %v1197, %v1199
      %v1201 = vadd.f32 %v1197, %v1200
      %vm1202 = vweird.f32 %v1067
      %vm1203 = vweird.f32 %v1197
      %vm1204 = vmor %vm1202, %vm1203
      %v1205 = vsel %vm1204, %v1197, %v1201
      %v1206 = vand.u32 2147483647, %v1067
      %vm1207 = vcmp.eq.f32.partialorder %v1206, 8.507059e+37
      %v1208 = vand.u32 %v1067, 2147483648
      %v1209 = vor.u32 1.1754944e-38, %v1208
      %v1210 = vsel %vm1207, %v1209, %v1205
      %v1211 = vmul.f32 14.285714, %v1210
      %v1212 = vrcp.pop %v1068
      %v1213 = vmul.f32 %v1068, %v1212
      %v1214 = vsub.f32 1.0, %v1213
      %v1215 = vmul.f32 %v1212, %v1214
      %v1216 = vadd.f32 %v1212, %v1215
      %vm1217 = vweird.f32 %v1068
      %vm1218 = vweird.f32 %v1212
      %vm1219 = vmor %vm1217, %vm1218
      %v1220 = vsel %vm1219, %v1212, %v1216
      %v1221 = vand.u32 2147483647, %v1068
      %vm1222 = vcmp.eq.f32.partialorder %v1221, 8.507059e+37
      %v1223 = vand.u32 %v1068, 2147483648
      %v1224 = vor.u32 1.1754944e-38, %v1223
      %v1225 = vsel %vm1222, %v1224, %v1220
      %v1226 = vmul.f32 14.285714, %v1225
      %v1227 = vrcp.pop %v1069
      %v1228 = vmul.f32 %v1069, %v1227
      %v1229 = vsub.f32 1.0, %v1228
      %v1230 = vmul.f32 %v1227, %v1229
      %v1231 = vadd.f32 %v1227, %v1230
      %vm1232 = vweird.f32 %v1069
      %vm1233 = vweird.f32 %v1227
      %vm1234 = vmor %vm1232, %vm1233
      %v1235 = vsel %vm1234, %v1227, %v1231
      %v1236 = vand.u32 2147483647, %v1069
      %vm1237 = vcmp.eq.f32.partialorder %v1236, 8.507059e+37
      %v1238 = vand.u32 %v1069, 2147483648
      %v1239 = vor.u32 1.1754944e-38, %v1238
      %v1240 = vsel %vm1237, %v1239, %v1235
      %v1241 = vmul.f32 14.285714, %v1240
      %v1242 = vrcp.pop %v1070
      %v1243 = vmul.f32 %v1070, %v1242
      %v1244 = vsub.f32 1.0, %v1243
      %v1245 = vmul.f32 %v1242, %v1244
      %v1246 = vadd.f32 %v1242, %v1245
      %vm1247 = vweird.f32 %v1070
      %vm1248 = vweird.f32 %v1242
      %vm1249 = vmor %vm1247, %vm1248
      %v1250 = vsel %vm1249, %v1242, %v1246
      %v1251 = vand.u32 2147483647, %v1070
      %vm1252 = vcmp.eq.f32.partialorder %v1251, 8.507059e+37
      %v1253 = vand.u32 %v1070, 2147483648
      %v1254 = vor.u32 1.1754944e-38, %v1253
      %v1255 = vsel %vm1252, %v1254, %v1250
      %v1256 = vmul.f32 14.285714, %v1255
      %v1257 = vrcp.pop %v1071
      %v1258 = vmul.f32 %v1071, %v1257
      %v1259 = vsub.f32 1.0, %v1258
      %v1260 = vmul.f32 %v1257, %v1259
      %v1261 = vadd.f32 %v1257, %v1260
      %vm1262 = vweird.f32 %v1071
      %vm1263 = vweird.f32 %v1257
      %vm1264 = vmor %vm1262, %vm1263
      %v1265 = vsel %vm1264, %v1257, %v1261
      %v1266 = vand.u32 2147483647, %v1071
      %vm1267 = vcmp.eq.f32.partialorder %v1266, 8.507059e+37
      %v1268 = vand.u32 %v1071, 2147483648
      %v1269 = vor.u32 1.1754944e-38, %v1268
      %v1270 = vsel %vm1267, %v1269, %v1265
      %v1271 = vmul.f32 14.285714, %v1270
      %v1272 = vrcp.pop %v1072
      %v1273 = vmul.f32 %v1072, %v1272
      %v1274 = vsub.f32 1.0, %v1273
      %v1275 = vmul.f32 %v1272, %v1274
      %v1276 = vadd.f32 %v1272, %v1275
      %vm1277 = vweird.f32 %v1072
      %vm1278 = vweird.f32 %v1272
      %vm1279 = vmor %vm1277, %vm1278
      %v1280 = vsel %vm1279, %v1272, %v1276
      %v1281 = vand.u32 2147483647, %v1072
      %vm1282 = vcmp.eq.f32.partialorder %v1281, 8.507059e+37
      %v1283 = vand.u32 %v1072, 2147483648
      %v1284 = vor.u32 1.1754944e-38, %v1283
      %v1285 = vsel %vm1282, %v1284, %v1280
      %v1286 = vmul.f32 14.285714, %v1285
      %v1287 = vrcp.pop %v1073
      %v1288 = vmul.f32 %v1073, %v1287
      %v1289 = vsub.f32 1.0, %v1288
      %v1290 = vmul.f32 %v1287, %v1289
      %v1291 = vadd.f32 %v1287, %v1290
      %vm1292 = vweird.f32 %v1073
      %vm1293 = vweird.f32 %v1287
      %vm1294 = vmor %vm1292, %vm1293
      %v1295 = vsel %vm1294, %v1287, %v1291
      %v1296 = vand.u32 2147483647, %v1073
      %vm1297 = vcmp.eq.f32.partialorder %v1296, 8.507059e+37
      %v1298 = vand.u32 %v1073, 2147483648
      %v1299 = vor.u32 1.1754944e-38, %v1298
      %v1300 = vsel %vm1297, %v1299, %v1295
      %v1301 = vmul.f32 14.285714, %v1300
      %v1302 = vrcp.pop %v1074
      %v1303 = vmul.f32 %v1074, %v1302
      %v1304 = vsub.f32 1.0, %v1303
      %v1305 = vmul.f32 %v1302, %v1304
      %v1306 = vadd.f32 %v1302, %v1305
      %vm1307 = vweird.f32 %v1074
      %vm1308 = vweird.f32 %v1302
      %vm1309 = vmor %vm1307, %vm1308
      %v1310 = vsel %vm1309, %v1302, %v1306
      %v1311 = vand.u32 2147483647, %v1074
      %vm1312 = vcmp.eq.f32.partialorder %v1311, 8.507059e+37
      %v1313 = vand.u32 %v1074, 2147483648
      %v1314 = vor.u32 1.1754944e-38, %v1313
      %v1315 = vsel %vm1312, %v1314, %v1310
      %v1316 = vmul.f32 14.285714, %v1315
      %v1317 = vrcp.pop %v1075
      %v1318 = vmul.f32 %v1075, %v1317
      %v1319 = vsub.f32 1.0, %v1318
      %v1320 = vmul.f32 %v1317, %v1319
      %v1321 = vadd.f32 %v1317, %v1320
      %vm1322 = vweird.f32 %v1075
      %vm1323 = vweird.f32 %v1317
      %vm1324 = vmor %vm1322, %vm1323
      %v1325 = vsel %vm1324, %v1317, %v1321
      %v1326 = vand.u32 2147483647, %v1075
      %vm1327 = vcmp.eq.f32.partialorder %v1326, 8.507059e+37
      %v1328 = vand.u32 %v1075, 2147483648
      %v1329 = vor.u32 1.1754944e-38, %v1328
      %v1330 = vsel %vm1327, %v1329, %v1325
      %v1331 = vmul.f32 14.285714, %v1330
      %v1332 = vrcp.pop %v1076
      %v1333 = vmul.f32 %v1076, %v1332
      %v1334 = vsub.f32 1.0, %v1333
      %v1335 = vmul.f32 %v1332, %v1334
      %v1336 = vadd.f32 %v1332, %v1335
      %vm1337 = vweird.f32 %v1076
      %vm1338 = vweird.f32 %v1332
      %vm1339 = vmor %vm1337, %vm1338
      %v1340 = vsel %vm1339, %v1332, %v1336
      %v1341 = vand.u32 2147483647, %v1076
      %vm1342 = vcmp.eq.f32.partialorder %v1341, 8.507059e+37
      %v1343 = vand.u32 %v1076, 2147483648
      %v1344 = vor.u32 1.1754944e-38, %v1343
      %v1345 = vsel %vm1342, %v1344, %v1340
      %v1346 = vmul.f32 14.285714, %v1345
      %v1347 = vrcp.pop %v1077
      %v1348 = vmul.f32 %v1077, %v1347
      %v1349 = vsub.f32 1.0, %v1348
      %v1350 = vmul.f32 %v1347, %v1349
      %v1351 = vadd.f32 %v1347, %v1350
      %vm1352 = vweird.f32 %v1077
      %vm1353 = vweird.f32 %v1347
      %vm1354 = vmor %vm1352, %vm1353
      %v1355 = vsel %vm1354, %v1347, %v1351
      %v1356 = vand.u32 2147483647, %v1077
      %vm1357 = vcmp.eq.f32.partialorder %v1356, 8.507059e+37
      %v1358 = vand.u32 %v1077, 2147483648
      %v1359 = vor.u32 1.1754944e-38, %v1358
      %v1360 = vsel %vm1357, %v1359, %v1355
      %v1361 = vmul.f32 14.285714, %v1360
      %v1362 = vrcp.pop %v1078
      %v1363 = vmul.f32 %v1078, %v1362
      %v1364 = vsub.f32 1.0, %v1363
      %v1365 = vmul.f32 %v1362, %v1364
      %v1366 = vadd.f32 %v1362, %v1365
      %vm1367 = vweird.f32 %v1078
      %vm1368 = vweird.f32 %v1362
      %vm1369 = vmor %vm1367, %vm1368
      %v1370 = vsel %vm1369, %v1362, %v1366
      %v1371 = vand.u32 2147483647, %v1078
      %vm1372 = vcmp.eq.f32.partialorder %v1371, 8.507059e+37
      %v1373 = vand.u32 %v1078, 2147483648
      %v1374 = vor.u32 1.1754944e-38, %v1373
      %v1375 = vsel %vm1372, %v1374, %v1370
      %v1376 = vmul.f32 14.285714, %v1375
      %v1377 = vrcp.pop %v1079
      %v1378 = vmul.f32 %v1079, %v1377
      %v1379 = vsub.f32 1.0, %v1378
      %v1380 = vmul.f32 %v1377, %v1379
      %v1381 = vadd.f32 %v1377, %v1380
      %vm1382 = vweird.f32 %v1079
      %vm1383 = vweird.f32 %v1377
      %vm1384 = vmor %vm1382, %vm1383
      %v1385 = vsel %vm1384, %v1377, %v1381
      %v1386 = vand.u32 2147483647, %v1079
      %vm1387 = vcmp.eq.f32.partialorder %v1386, 8.507059e+37
      %v1388 = vand.u32 %v1079, 2147483648
      %v1389 = vor.u32 1.1754944e-38, %v1388
      %v1390 = vsel %vm1387, %v1389, %v1385
      %v1391 = vmul.f32 14.285714, %v1390
      %v1392 = vrcp.pop %v1080
      %v1393 = vmul.f32 %v1080, %v1392
      %v1394 = vsub.f32 1.0, %v1393
      %v1395 = vmul.f32 %v1392, %v1394
      %v1396 = vadd.f32 %v1392, %v1395
      %vm1397 = vweird.f32 %v1080
      %vm1398 = vweird.f32 %v1392
      %vm1399 = vmor %vm1397, %vm1398
      %v1400 = vsel %vm1399, %v1392, %v1396
      %v1401 = vand.u32 2147483647, %v1080
      %vm1402 = vcmp.eq.f32.partialorder %v1401, 8.507059e+37
      %v1403 = vand.u32 %v1080, 2147483648
      %v1404 = vor.u32 1.1754944e-38, %v1403
      %v1405 = vsel %vm1402, %v1404, %v1400
      %v1406 = vmul.f32 14.285714, %v1405
      %v1407 = vrcp.pop %v1081
      %v1408 = vmul.f32 %v1081, %v1407
      %v1409 = vsub.f32 1.0, %v1408
      %v1410 = vmul.f32 %v1407, %v1409
      %v1411 = vadd.f32 %v1407, %v1410
      %vm1412 = vweird.f32 %v1081
      %vm1413 = vweird.f32 %v1407
      %vm1414 = vmor %vm1412, %vm1413
      %v1415 = vsel %vm1414, %v1407, %v1411
      %v1416 = vand.u32 2147483647, %v1081
      %vm1417 = vcmp.eq.f32.partialorder %v1416, 8.507059e+37
      %v1418 = vand.u32 %v1081, 2147483648
      %v1419 = vor.u32 1.1754944e-38, %v1418
      %v1420 = vsel %vm1417, %v1419, %v1415
      %v1421 = vmul.f32 14.285714, %v1420
      %v1422 = vrcp.pop %v1082
      %v1423 = vmul.f32 %v1082, %v1422
      %v1424 = vsub.f32 1.0, %v1423
      %v1425 = vmul.f32 %v1422, %v1424
      %v1426 = vadd.f32 %v1422, %v1425
      %vm1427 = vweird.f32 %v1082
      %vm1428 = vweird.f32 %v1422
      %vm1429 = vmor %vm1427, %vm1428
      %v1430 = vsel %vm1429, %v1422, %v1426
      %v1431 = vand.u32 2147483647, %v1082
      %vm1432 = vcmp.eq.f32.partialorder %v1431, 8.507059e+37
      %v1433 = vand.u32 %v1082, 2147483648
      %v1434 = vor.u32 1.1754944e-38, %v1433
      %v1435 = vsel %vm1432, %v1434, %v1430
      %v1436 = vmul.f32 14.285714, %v1435
      %v1437 = vrcp.pop %v1083
      %v1438 = vmul.f32 %v1083, %v1437
      %v1439 = vsub.f32 1.0, %v1438
      %v1440 = vmul.f32 %v1437, %v1439
      %v1441 = vadd.f32 %v1437, %v1440
      %vm1442 = vweird.f32 %v1083
      %vm1443 = vweird.f32 %v1437
      %vm1444 = vmor %vm1442, %vm1443
      %v1445 = vsel %vm1444, %v1437, %v1441
      %v1446 = vand.u32 2147483647, %v1083
      %vm1447 = vcmp.eq.f32.partialorder %v1446, 8.507059e+37
      %v1448 = vand.u32 %v1083, 2147483648
      %v1449 = vor.u32 1.1754944e-38, %v1448
      %v1450 = vsel %vm1447, %v1449, %v1445
      %v1451 = vmul.f32 14.285714, %v1450
      %v1452 = vrcp.pop %v1084
      %v1453 = vmul.f32 %v1084, %v1452
      %v1454 = vsub.f32 1.0, %v1453
      %v1455 = vmul.f32 %v1452, %v1454
      %v1456 = vadd.f32 %v1452, %v1455
      %vm1457 = vweird.f32 %v1084
      %vm1458 = vweird.f32 %v1452
      %vm1459 = vmor %vm1457, %vm1458
      %v1460 = vsel %vm1459, %v1452, %v1456
      %v1461 = vand.u32 2147483647, %v1084
      %vm1462 = vcmp.eq.f32.partialorder %v1461, 8.507059e+37
      %v1463 = vand.u32 %v1084, 2147483648
      %v1464 = vor.u32 1.1754944e-38, %v1463
      %v1465 = vsel %vm1462, %v1464, %v1460
      %v1466 = vmul.f32 14.285714, %v1465
      %v1467 = vrcp.pop %v1085
      %v1468 = vmul.f32 %v1085, %v1467
      %v1469 = vsub.f32 1.0, %v1468
      %v1470 = vmul.f32 %v1467, %v1469
      %v1471 = vadd.f32 %v1467, %v1470
      %vm1472 = vweird.f32 %v1085
      %vm1473 = vweird.f32 %v1467
      %vm1474 = vmor %vm1472, %vm1473
      %v1475 = vsel %vm1474, %v1467, %v1471
      %v1476 = vand.u32 2147483647, %v1085
      %vm1477 = vcmp.eq.f32.partialorder %v1476, 8.507059e+37
      %v1478 = vand.u32 %v1085, 2147483648
      %v1479 = vor.u32 1.1754944e-38, %v1478
      %v1480 = vsel %vm1477, %v1479, %v1475
      %v1481 = vmul.f32 14.285714, %v1480
      %v1482 = vrcp.pop %v1086
      %v1483 = vmul.f32 %v1086, %v1482
      %v1484 = vsub.f32 1.0, %v1483
      %v1485 = vmul.f32 %v1482, %v1484
      %v1486 = vadd.f32 %v1482, %v1485
      %vm1487 = vweird.f32 %v1086
      %vm1488 = vweird.f32 %v1482
      %vm1489 = vmor %vm1487, %vm1488
      %v1490 = vsel %vm1489, %v1482, %v1486
      %v1491 = vand.u32 2147483647, %v1086
      %vm1492 = vcmp.eq.f32.partialorder %v1491, 8.507059e+37
      %v1493 = vand.u32 %v1086, 2147483648
      %v1494 = vor.u32 1.1754944e-38, %v1493
      %v1495 = vsel %vm1492, %v1494, %v1490
      %v1496 = vmul.f32 14.285714, %v1495
      %v1497 = vrcp.pop %v1087
      %v1498 = vmul.f32 %v1087, %v1497
      %v1499 = vsub.f32 1.0, %v1498
      %v1500 = vmul.f32 %v1497, %v1499
      %v1501 = vadd.f32 %v1497, %v1500
      %vm1502 = vweird.f32 %v1087
      %vm1503 = vweird.f32 %v1497
      %vm1504 = vmor %vm1502, %vm1503
      %v1505 = vsel %vm1504, %v1497, %v1501
      %v1506 = vand.u32 2147483647, %v1087
      %vm1507 = vcmp.eq.f32.partialorder %v1506, 8.507059e+37
      %v1508 = vand.u32 %v1087, 2147483648
      %v1509 = vor.u32 1.1754944e-38, %v1508
      %v1510 = vsel %vm1507, %v1509, %v1505
      %v1511 = vmul.f32 14.285714, %v1510
      %v1512 = vrcp.pop %v1088
      %v1513 = vmul.f32 %v1088, %v1512
      %v1514 = vsub.f32 1.0, %v1513
      %v1515 = vmul.f32 %v1512, %v1514
      %v1516 = vadd.f32 %v1512, %v1515
      %vm1517 = vweird.f32 %v1088
      %vm1518 = vweird.f32 %v1512
      %vm1519 = vmor %vm1517, %vm1518
      %v1520 = vsel %vm1519, %v1512, %v1516
      %v1521 = vand.u32 2147483647, %v1088
      %vm1522 = vcmp.eq.f32.partialorder %v1521, 8.507059e+37
      %v1523 = vand.u32 %v1088, 2147483648
      %v1524 = vor.u32 1.1754944e-38, %v1523
      %v1525 = vsel %vm1522, %v1524, %v1520
      %v1526 = vmul.f32 14.285714, %v1525
      %v1527 = vrcp.pop %v1089
      %v1528 = vmul.f32 %v1089, %v1527
      %v1529 = vsub.f32 1.0, %v1528
      %v1530 = vmul.f32 %v1527, %v1529
      %v1531 = vadd.f32 %v1527, %v1530
      %vm1532 = vweird.f32 %v1089
      %vm1533 = vweird.f32 %v1527
      %vm1534 = vmor %vm1532, %vm1533
      %v1535 = vsel %vm1534, %v1527, %v1531
      %v1536 = vand.u32 2147483647, %v1089
      %vm1537 = vcmp.eq.f32.partialorder %v1536, 8.507059e+37
      %v1538 = vand.u32 %v1089, 2147483648
      %v1539 = vor.u32 1.1754944e-38, %v1538
      %v1540 = vsel %vm1537, %v1539, %v1535
      %v1541 = vmul.f32 14.285714, %v1540
      %v1542 = vrcp.pop %v1090
      %v1543 = vmul.f32 %v1090, %v1542
      %v1544 = vsub.f32 1.0, %v1543
      %v1545 = vmul.f32 %v1542, %v1544
      %v1546 = vadd.f32 %v1542, %v1545
      %vm1547 = vweird.f32 %v1090
      %vm1548 = vweird.f32 %v1542
      %vm1549 = vmor %vm1547, %vm1548
      %v1550 = vsel %vm1549, %v1542, %v1546
      %v1551 = vand.u32 2147483647, %v1090
      %vm1552 = vcmp.eq.f32.partialorder %v1551, 8.507059e+37
      %v1553 = vand.u32 %v1090, 2147483648
      %v1554 = vor.u32 1.1754944e-38, %v1553
      %v1555 = vsel %vm1552, %v1554, %v1550
      %v1556 = vmul.f32 14.285714, %v1555
      %v1557 = vrcp.pop %v1091
      %v1558 = vmul.f32 %v1091, %v1557
      %v1559 = vsub.f32 1.0, %v1558
      %v1560 = vmul.f32 %v1557, %v1559
      %v1561 = vadd.f32 %v1557, %v1560
      %vm1562 = vweird.f32 %v1091
      %vm1563 = vweird.f32 %v1557
      %vm1564 = vmor %vm1562, %vm1563
      %v1565 = vsel %vm1564, %v1557, %v1561
      %v1566 = vand.u32 2147483647, %v1091
      %vm1567 = vcmp.eq.f32.partialorder %v1566, 8.507059e+37
      %v1568 = vand.u32 %v1091, 2147483648
      %v1569 = vor.u32 1.1754944e-38, %v1568
      %v1570 = vsel %vm1567, %v1569, %v1565
      %v1571 = vmul.f32 14.285714, %v1570
      %v1572 = vmul.f32 %v899, %v1106
      %v1573 = vmul.f32 %v900, %v1121
      %v1574 = vmul.f32 %v901, %v1136
      %v1575 = vmul.f32 %v902, %v1151
      %v1576 = vmul.f32 %v903, %v1166
      %v1577 = vmul.f32 %v904, %v1181
      %v1578 = vmul.f32 %v905, %v1196
      %v1579 = vmul.f32 %v906, %v1211
      %v1580 = vmul.f32 %v907, %v1226
      %v1581 = vmul.f32 %v908, %v1241
      %v1582 = vmul.f32 %v909, %v1256
      %v1583 = vmul.f32 %v910, %v1271
      %v1584 = vmul.f32 %v911, %v1286
      %v1585 = vmul.f32 %v912, %v1301
      %v1586 = vmul.f32 %v913, %v1316
      %v1587 = vmul.f32 %v914, %v1331
      %v1588 = vmul.f32 %v915, %v1346
      %v1589 = vmul.f32 %v916, %v1361
      %v1590 = vmul.f32 %v917, %v1376
      %v1591 = vmul.f32 %v918, %v1391
      %v1592 = vmul.f32 %v919, %v1406
      %v1593 = vmul.f32 %v920, %v1421
      %v1594 = vmul.f32 %v921, %v1436
      %v1595 = vmul.f32 %v922, %v1451
      %v1596 = vmul.f32 %v923, %v1466
      %v1597 = vmul.f32 %v924, %v1481
      %v1598 = vmul.f32 %v925, %v1496
      %v1599 = vmul.f32 %v926, %v1511
      %v1600 = vmul.f32 %v927, %v1526
      %v1601 = vmul.f32 %v928, %v1541
      %v1602 = vmul.f32 %v929, %v1556
      %v1603 = vmul.f32 %v930, %v1571
      %s1604 = smul.u32 %s18, 256
      %s1605 = scalar_lea.vmem [#allocation2], %s1604
      %v1606 = vld [vmem:[%s1605] sm:$0xff]
      %v1607 = vld [vmem:[%s1605 + $0x8] sm:$0xff]
      %v1608 = vld [vmem:[%s1605 + $0x10] sm:$0xff]
      %v1609 = vld [vmem:[%s1605 + $0x18] sm:$0xff]
      %v1610 = vld [vmem:[%s1605 + $0x20] sm:$0xff]
      %v1611 = vld [vmem:[%s1605 + $0x28] sm:$0xff]
      %v1612 = vld [vmem:[%s1605 + $0x30] sm:$0xff]
      %v1613 = vld [vmem:[%s1605 + $0x38] sm:$0xff]
      %v1614 = vld [vmem:[%s1605 + $0x40] sm:$0xff]
      %v1615 = vld [vmem:[%s1605 + $0x48] sm:$0xff]
      %v1616 = vld [vmem:[%s1605 + $0x50] sm:$0xff]
      %v1617 = vld [vmem:[%s1605 + $0x58] sm:$0xff]
      %v1618 = vld [vmem:[%s1605 + $0x60] sm:$0xff]
      %v1619 = vld [vmem:[%s1605 + $0x68] sm:$0xff]
      %v1620 = vld [vmem:[%s1605 + $0x70] sm:$0xff]
      %v1621 = vld [vmem:[%s1605 + $0x78] sm:$0xff]
      %v1622 = vld [vmem:[%s1605 + $0x80] sm:$0xff]
      %v1623 = vld [vmem:[%s1605 + $0x88] sm:$0xff]
      %v1624 = vld [vmem:[%s1605 + $0x90] sm:$0xff]
      %v1625 = vld [vmem:[%s1605 + $0x98] sm:$0xff]
      %v1626 = vld [vmem:[%s1605 + $0xa0] sm:$0xff]
      %v1627 = vld [vmem:[%s1605 + $0xa8] sm:$0xff]
      %v1628 = vld [vmem:[%s1605 + $0xb0] sm:$0xff]
      %v1629 = vld [vmem:[%s1605 + $0xb8] sm:$0xff]
      %v1630 = vld [vmem:[%s1605 + $0xc0] sm:$0xff]
      %v1631 = vld [vmem:[%s1605 + $0xc8] sm:$0xff]
      %v1632 = vld [vmem:[%s1605 + $0xd0] sm:$0xff]
      %v1633 = vld [vmem:[%s1605 + $0xd8] sm:$0xff]
      %v1634 = vld [vmem:[%s1605 + $0xe0] sm:$0xff]
      %v1635 = vld [vmem:[%s1605 + $0xe8] sm:$0xff]
      %v1636 = vld [vmem:[%s1605 + $0xf0] sm:$0xff]
      %v1637 = vld [vmem:[%s1605 + $0xf8] sm:$0xff]
      %v1638 = vmul.f32 %v1572, %v1606
      %v1639 = vmul.f32 %v1573, %v1607
      %v1640 = vmul.f32 %v1574, %v1608
      %v1641 = vmul.f32 %v1575, %v1609
      %v1642 = vmul.f32 %v1576, %v1610
      %v1643 = vmul.f32 %v1577, %v1611
      %v1644 = vmul.f32 %v1578, %v1612
      %v1645 = vmul.f32 %v1579, %v1613
      %v1646 = vmul.f32 %v1580, %v1614
      %v1647 = vmul.f32 %v1581, %v1615
      %v1648 = vmul.f32 %v1582, %v1616
      %v1649 = vmul.f32 %v1583, %v1617
      %v1650 = vmul.f32 %v1584, %v1618
      %v1651 = vmul.f32 %v1585, %v1619
      %v1652 = vmul.f32 %v1586, %v1620
      %v1653 = vmul.f32 %v1587, %v1621
      %v1654 = vmul.f32 %v1588, %v1622
      %v1655 = vmul.f32 %v1589, %v1623
      %v1656 = vmul.f32 %v1590, %v1624
      %v1657 = vmul.f32 %v1591, %v1625
      %v1658 = vmul.f32 %v1592, %v1626
      %v1659 = vmul.f32 %v1593, %v1627
      %v1660 = vmul.f32 %v1594, %v1628
      %v1661 = vmul.f32 %v1595, %v1629
      %v1662 = vmul.f32 %v1596, %v1630
      %v1663 = vmul.f32 %v1597, %v1631
      %v1664 = vmul.f32 %v1598, %v1632
      %v1665 = vmul.f32 %v1599, %v1633
      %v1666 = vmul.f32 %v1600, %v1634
      %v1667 = vmul.f32 %v1601, %v1635
      %v1668 = vmul.f32 %v1602, %v1636
      %v1669 = vmul.f32 %v1603, %v1637
      %v1670 = vsel %vm963, %v1638, 0.0
      %1671 = vadd.xlane.f32.xlu0 %v1670
      %v1672 = vpop.xlane.xlu0 %1671
      %v1673 = vsel %vm963, %v1639, 0.0
      %1674 = vadd.xlane.f32.xlu0 %v1673
      %v1675 = vpop.xlane.xlu0 %1674
      %v1676 = vsel %vm963, %v1640, 0.0
      %1677 = vadd.xlane.f32.xlu0 %v1676
      %v1678 = vpop.xlane.xlu0 %1677
      %v1679 = vsel %vm963, %v1641, 0.0
      %1680 = vadd.xlane.f32.xlu0 %v1679
      %v1681 = vpop.xlane.xlu0 %1680
      %v1682 = vsel %vm963, %v1642, 0.0
      %1683 = vadd.xlane.f32.xlu0 %v1682
      %v1684 = vpop.xlane.xlu0 %1683
      %v1685 = vsel %vm963, %v1643, 0.0
      %1686 = vadd.xlane.f32.xlu0 %v1685
      %v1687 = vpop.xlane.xlu0 %1686
      %v1688 = vsel %vm963, %v1644, 0.0
      %1689 = vadd.xlane.f32.xlu0 %v1688
      %v1690 = vpop.xlane.xlu0 %1689
      %v1691 = vsel %vm963, %v1645, 0.0
      %1692 = vadd.xlane.f32.xlu0 %v1691
      %v1693 = vpop.xlane.xlu0 %1692
      %v1694 = vsel %vm963, %v1646, 0.0
      %1695 = vadd.xlane.f32.xlu0 %v1694
      %v1696 = vpop.xlane.xlu0 %1695
      %v1697 = vsel %vm963, %v1647, 0.0
      %1698 = vadd.xlane.f32.xlu0 %v1697
      %v1699 = vpop.xlane.xlu0 %1698
      %v1700 = vsel %vm963, %v1648, 0.0
      %1701 = vadd.xlane.f32.xlu0 %v1700
      %v1702 = vpop.xlane.xlu0 %1701
      %v1703 = vsel %vm963, %v1649, 0.0
      %1704 = vadd.xlane.f32.xlu0 %v1703
      %v1705 = vpop.xlane.xlu0 %1704
      %v1706 = vsel %vm963, %v1650, 0.0
      %1707 = vadd.xlane.f32.xlu0 %v1706
      %v1708 = vpop.xlane.xlu0 %1707
      %v1709 = vsel %vm963, %v1651, 0.0
      %1710 = vadd.xlane.f32.xlu0 %v1709
      %v1711 = vpop.xlane.xlu0 %1710
      %v1712 = vsel %vm963, %v1652, 0.0
      %1713 = vadd.xlane.f32.xlu0 %v1712
      %v1714 = vpop.xlane.xlu0 %1713
      %v1715 = vsel %vm963, %v1653, 0.0
      %1716 = vadd.xlane.f32.xlu0 %v1715
      %v1717 = vpop.xlane.xlu0 %1716
      %v1718 = vsel %vm963, %v1654, 0.0
      %1719 = vadd.xlane.f32.xlu0 %v1718
      %v1720 = vpop.xlane.xlu0 %1719
      %v1721 = vsel %vm963, %v1655, 0.0
      %1722 = vadd.xlane.f32.xlu0 %v1721
      %v1723 = vpop.xlane.xlu0 %1722
      %v1724 = vsel %vm963, %v1656, 0.0
      %1725 = vadd.xlane.f32.xlu0 %v1724
      %v1726 = vpop.xlane.xlu0 %1725
      %v1727 = vsel %vm963, %v1657, 0.0
      %1728 = vadd.xlane.f32.xlu0 %v1727
      %v1729 = vpop.xlane.xlu0 %1728
      %v1730 = vsel %vm963, %v1658, 0.0
      %1731 = vadd.xlane.f32.xlu0 %v1730
      %v1732 = vpop.xlane.xlu0 %1731
      %v1733 = vsel %vm963, %v1659, 0.0
      %1734 = vadd.xlane.f32.xlu0 %v1733
      %v1735 = vpop.xlane.xlu0 %1734
      %v1736 = vsel %vm963, %v1660, 0.0
      %1737 = vadd.xlane.f32.xlu0 %v1736
      %v1738 = vpop.xlane.xlu0 %1737
      %v1739 = vsel %vm963, %v1661, 0.0
      %1740 = vadd.xlane.f32.xlu0 %v1739
      %v1741 = vpop.xlane.xlu0 %1740
      %v1742 = vsel %vm963, %v1662, 0.0
      %1743 = vadd.xlane.f32.xlu0 %v1742
      %v1744 = vpop.xlane.xlu0 %1743
      %v1745 = vsel %vm963, %v1663, 0.0
      %1746 = vadd.xlane.f32.xlu0 %v1745
      %v1747 = vpop.xlane.xlu0 %1746
      %v1748 = vsel %vm963, %v1664, 0.0
      %1749 = vadd.xlane.f32.xlu0 %v1748
      %v1750 = vpop.xlane.xlu0 %1749
      %v1751 = vsel %vm963, %v1665, 0.0
      %1752 = vadd.xlane.f32.xlu0 %v1751
      %v1753 = vpop.xlane.xlu0 %1752
      %v1754 = vsel %vm963, %v1666, 0.0
      %1755 = vadd.xlane.f32.xlu0 %v1754
      %v1756 = vpop.xlane.xlu0 %1755
      %v1757 = vsel %vm963, %v1667, 0.0
      %1758 = vadd.xlane.f32.xlu0 %v1757
      %v1759 = vpop.xlane.xlu0 %1758
      %v1760 = vsel %vm963, %v1668, 0.0
      %1761 = vadd.xlane.f32.xlu0 %v1760
      %v1762 = vpop.xlane.xlu0 %1761
      %v1763 = vsel %vm963, %v1669, 0.0
      %1764 = vadd.xlane.f32.xlu0 %v1763
      %v1765 = vpop.xlane.xlu0 %1764
      %v1766 = vld [vmem:[#allocation2] sm:$0xff]
      %v1767 = vld [vmem:[#allocation2 + $0x8] sm:$0xff]
      %v1768 = vld [vmem:[#allocation2 + $0x10] sm:$0xff]
      %v1769 = vld [vmem:[#allocation2 + $0x18] sm:$0xff]
      %v1770 = vld [vmem:[#allocation2 + $0x20] sm:$0xff]
      %v1771 = vld [vmem:[#allocation2 + $0x28] sm:$0xff]
      %v1772 = vld [vmem:[#allocation2 + $0x30] sm:$0xff]
      %v1773 = vld [vmem:[#allocation2 + $0x38] sm:$0xff]
      %v1774 = vld [vmem:[#allocation2 + $0x40] sm:$0xff]
      %v1775 = vld [vmem:[#allocation2 + $0x48] sm:$0xff]
      %v1776 = vld [vmem:[#allocation2 + $0x50] sm:$0xff]
      %v1777 = vld [vmem:[#allocation2 + $0x58] sm:$0xff]
      %v1778 = vld [vmem:[#allocation2 + $0x60] sm:$0xff]
      %v1779 = vld [vmem:[#allocation2 + $0x68] sm:$0xff]
      %v1780 = vld [vmem:[#allocation2 + $0x70] sm:$0xff]
      %v1781 = vld [vmem:[#allocation2 + $0x78] sm:$0xff]
      %v1782 = vld [vmem:[#allocation2 + $0x80] sm:$0xff]
      %v1783 = vld [vmem:[#allocation2 + $0x88] sm:$0xff]
      %v1784 = vld [vmem:[#allocation2 + $0x90] sm:$0xff]
      %v1785 = vld [vmem:[#allocation2 + $0x98] sm:$0xff]
      %v1786 = vld [vmem:[#allocation2 + $0xa0] sm:$0xff]
      %v1787 = vld [vmem:[#allocation2 + $0xa8] sm:$0xff]
      %v1788 = vld [vmem:[#allocation2 + $0xb0] sm:$0xff]
      %v1789 = vld [vmem:[#allocation2 + $0xb8] sm:$0xff]
      %v1790 = vld [vmem:[#allocation2 + $0xc0] sm:$0xff]
      %v1791 = vld [vmem:[#allocation2 + $0xc8] sm:$0xff]
      %v1792 = vld [vmem:[#allocation2 + $0xd0] sm:$0xff]
      %v1793 = vld [vmem:[#allocation2 + $0xd8] sm:$0xff]
      %v1794 = vld [vmem:[#allocation2 + $0xe0] sm:$0xff]
      %v1795 = vld [vmem:[#allocation2 + $0xe8] sm:$0xff]
      %v1796 = vld [vmem:[#allocation2 + $0xf0] sm:$0xff]
      %v1797 = vld [vmem:[#allocation2 + $0xf8] sm:$0xff]
      %v1799 = vsel %vm963, %v1572, 0
      %v1802 = vsel %vm963, %v1573, 0
      %v1805 = vsel %vm963, %v1574, 0
      %v1808 = vsel %vm963, %v1575, 0
      %v1811 = vsel %vm963, %v1576, 0
      %v1814 = vsel %vm963, %v1577, 0
      %v1817 = vsel %vm963, %v1578, 0
      %v1820 = vsel %vm963, %v1579, 0
      %v1823 = vsel %vm963, %v1580, 0
      %v1826 = vsel %vm963, %v1581, 0
      %v1829 = vsel %vm963, %v1582, 0
      %v1832 = vsel %vm963, %v1583, 0
      %v1835 = vsel %vm963, %v1584, 0
      %v1838 = vsel %vm963, %v1585, 0
      %v1841 = vsel %vm963, %v1586, 0
      %v1844 = vsel %vm963, %v1587, 0
      %v1847 = vsel %vm963, %v1588, 0
      %v1850 = vsel %vm963, %v1589, 0
      %v1853 = vsel %vm963, %v1590, 0
      %v1856 = vsel %vm963, %v1591, 0
      %v1859 = vsel %vm963, %v1592, 0
      %v1862 = vsel %vm963, %v1593, 0
      %v1865 = vsel %vm963, %v1594, 0
      %v1868 = vsel %vm963, %v1595, 0
      %v1871 = vsel %vm963, %v1596, 0
      %v1874 = vsel %vm963, %v1597, 0
      %v1877 = vsel %vm963, %v1598, 0
      %v1880 = vsel %vm963, %v1599, 0
      %v1883 = vsel %vm963, %v1600, 0
      %v1886 = vsel %vm963, %v1601, 0
      %v1889 = vsel %vm963, %v1602, 0
      %v1892 = vsel %vm963, %v1603, 0
      %v1895 = vsel %vm963, %v1766, 0
      %v1898 = vsel %vm963, %v1767, 0
      %v1901 = vsel %vm963, %v1768, 0
      %v1904 = vsel %vm963, %v1769, 0
      %v1907 = vsel %vm963, %v1770, 0
      %v1910 = vsel %vm963, %v1771, 0
      %v1913 = vsel %vm963, %v1772, 0
      %v1916 = vsel %vm963, %v1773, 0
      %v1919 = vsel %vm963, %v1774, 0
      %v1922 = vsel %vm963, %v1775, 0
      %v1925 = vsel %vm963, %v1776, 0
      %v1928 = vsel %vm963, %v1777, 0
      %v1931 = vsel %vm963, %v1778, 0
      %v1934 = vsel %vm963, %v1779, 0
      %v1937 = vsel %vm963, %v1780, 0
      %v1940 = vsel %vm963, %v1781, 0
      %v1943 = vsel %vm963, %v1782, 0
      %v1946 = vsel %vm963, %v1783, 0
      %v1949 = vsel %vm963, %v1784, 0
      %v1952 = vsel %vm963, %v1785, 0
      %v1955 = vsel %vm963, %v1786, 0
      %v1958 = vsel %vm963, %v1787, 0
      %v1961 = vsel %vm963, %v1788, 0
      %v1964 = vsel %vm963, %v1789, 0
      %v1967 = vsel %vm963, %v1790, 0
      %v1970 = vsel %vm963, %v1791, 0
      %v1973 = vsel %vm963, %v1792, 0
      %v1976 = vsel %vm963, %v1793, 0
      %v1979 = vsel %vm963, %v1794, 0
      %v1982 = vsel %vm963, %v1795, 0
      %v1985 = vsel %vm963, %v1796, 0
      %v1988 = vsel %vm963, %v1797, 0
      %1990 = vmatpush.xpose.msra.mxu0 %v1940
      %1991 = vmatpush.xpose.msra.mxu0 %v1937
      %1992 = vmatpush.xpose.msra.mxu0 %v1934
      %1993 = vmatpush.xpose.msra.mxu0 %v1931
      %1994 = vmatpush.xpose.msra.mxu0 %v1928
      %1995 = vmatpush.xpose.msra.mxu0 %v1925
      %1996 = vmatpush.xpose.msra.mxu0 %v1922
      %1997 = vmatpush.xpose.msra.mxu0 %v1919
      %1998 = vmatpush.xpose.msra.mxu0 %v1916
      %1999 = vmatpush.xpose.msra.mxu0 %v1913
      %2000 = vmatpush.xpose.msra.mxu0 %v1910
      %2001 = vmatpush.xpose.msra.mxu0 %v1907
      %2002 = vmatpush.xpose.msra.mxu0 %v1904
      %2003 = vmatpush.xpose.msra.mxu0 %v1901
      %2004 = vmatpush.xpose.msra.mxu0 %v1898
      %2005 = vmatpush.xpose.msra.mxu0 %v1895
      %2006 = vmatmul.f32.gmra.mxu0 %v1799
      %v2007 = vpop.f32.mrf.mxu0
      %v2008 = vadd.f32 0.0, %v2007
      %2009 = vmatmul.f32.gmra.mxu0 %v1802
      %v2010 = vpop.f32.mrf.mxu0
      %v2011 = vadd.f32 0.0, %v2010
      %2012 = vmatmul.f32.gmra.mxu0 %v1805
      %v2013 = vpop.f32.mrf.mxu0
      %v2014 = vadd.f32 0.0, %v2013
      %2015 = vmatmul.f32.gmra.mxu0 %v1808
      %v2016 = vpop.f32.mrf.mxu0
      %v2017 = vadd.f32 0.0, %v2016
      %2018 = vmatmul.f32.gmra.mxu0 %v1811
      %v2019 = vpop.f32.mrf.mxu0
      %v2020 = vadd.f32 0.0, %v2019
      %2021 = vmatmul.f32.gmra.mxu0 %v1814
      %v2022 = vpop.f32.mrf.mxu0
      %v2023 = vadd.f32 0.0, %v2022
      %2024 = vmatmul.f32.gmra.mxu0 %v1817
      %v2025 = vpop.f32.mrf.mxu0
      %v2026 = vadd.f32 0.0, %v2025
      %2027 = vmatmul.f32.gmra.mxu0 %v1820
      %v2028 = vpop.f32.mrf.mxu0
      %v2029 = vadd.f32 0.0, %v2028
      %2030 = vmatmul.f32.gmra.mxu0 %v1823
      %v2031 = vpop.f32.mrf.mxu0
      %v2032 = vadd.f32 0.0, %v2031
      %2033 = vmatmul.f32.gmra.mxu0 %v1826
      %v2034 = vpop.f32.mrf.mxu0
      %v2035 = vadd.f32 0.0, %v2034
      %2036 = vmatmul.f32.gmra.mxu0 %v1829
      %v2037 = vpop.f32.mrf.mxu0
      %v2038 = vadd.f32 0.0, %v2037
      %2039 = vmatmul.f32.gmra.mxu0 %v1832
      %v2040 = vpop.f32.mrf.mxu0
      %v2041 = vadd.f32 0.0, %v2040
      %2042 = vmatmul.f32.gmra.mxu0 %v1835
      %v2043 = vpop.f32.mrf.mxu0
      %v2044 = vadd.f32 0.0, %v2043
      %2045 = vmatmul.f32.gmra.mxu0 %v1838
      %v2046 = vpop.f32.mrf.mxu0
      %v2047 = vadd.f32 0.0, %v2046
      %2048 = vmatmul.f32.gmra.mxu0 %v1841
      %v2049 = vpop.f32.mrf.mxu0
      %v2050 = vadd.f32 0.0, %v2049
      %2051 = vmatmul.f32.gmra.mxu0 %v1844
      %v2052 = vpop.f32.mrf.mxu0
      %v2053 = vadd.f32 0.0, %v2052
      %2054 = vmatmul.f32.gmra.mxu0 %v1847
      %v2055 = vpop.f32.mrf.mxu0
      %v2056 = vadd.f32 0.0, %v2055
      %2057 = vmatmul.f32.gmra.mxu0 %v1850
      %v2058 = vpop.f32.mrf.mxu0
      %v2059 = vadd.f32 0.0, %v2058
      %2060 = vmatmul.f32.gmra.mxu0 %v1853
      %v2061 = vpop.f32.mrf.mxu0
      %v2062 = vadd.f32 0.0, %v2061
      %2063 = vmatmul.f32.gmra.mxu0 %v1856
      %v2064 = vpop.f32.mrf.mxu0
      %v2065 = vadd.f32 0.0, %v2064
      %2066 = vmatmul.f32.gmra.mxu0 %v1859
      %v2067 = vpop.f32.mrf.mxu0
      %v2068 = vadd.f32 0.0, %v2067
      %2069 = vmatmul.f32.gmra.mxu0 %v1862
      %v2070 = vpop.f32.mrf.mxu0
      %v2071 = vadd.f32 0.0, %v2070
      %2072 = vmatmul.f32.gmra.mxu0 %v1865
      %v2073 = vpop.f32.mrf.mxu0
      %v2074 = vadd.f32 0.0, %v2073
      %2075 = vmatmul.f32.gmra.mxu0 %v1868
      %v2076 = vpop.f32.mrf.mxu0
      %v2077 = vadd.f32 0.0, %v2076
      %2078 = vmatmul.f32.gmra.mxu0 %v1871
      %v2079 = vpop.f32.mrf.mxu0
      %v2080 = vadd.f32 0.0, %v2079
      %2081 = vmatmul.f32.gmra.mxu0 %v1874
      %v2082 = vpop.f32.mrf.mxu0
      %v2083 = vadd.f32 0.0, %v2082
      %2084 = vmatmul.f32.gmra.mxu0 %v1877
      %v2085 = vpop.f32.mrf.mxu0
      %v2086 = vadd.f32 0.0, %v2085
      %2087 = vmatmul.f32.gmra.mxu0 %v1880
      %v2088 = vpop.f32.mrf.mxu0
      %v2089 = vadd.f32 0.0, %v2088
      %2090 = vmatmul.f32.gmra.mxu0 %v1883
      %v2091 = vpop.f32.mrf.mxu0
      %v2092 = vadd.f32 0.0, %v2091
      %2093 = vmatmul.f32.gmra.mxu0 %v1886
      %v2094 = vpop.f32.mrf.mxu0
      %v2095 = vadd.f32 0.0, %v2094
      %2096 = vmatmul.f32.gmra.mxu0 %v1889
      %v2097 = vpop.f32.mrf.mxu0
      %v2098 = vadd.f32 0.0, %v2097
      %2099 = vmatmul.f32.gmra.mxu0 %v1892
      %v2100 = vpop.f32.mrf.mxu0
      %v2101 = vadd.f32 0.0, %v2100
      %2102 = vdwg.mxu0
      %2103 = vmatpush.xpose.msra.mxu0 %v1988
      %2104 = vmatpush.xpose.msra.mxu0 %v1985
      %2105 = vmatpush.xpose.msra.mxu0 %v1982
      %2106 = vmatpush.xpose.msra.mxu0 %v1979
      %2107 = vmatpush.xpose.msra.mxu0 %v1976
      %2108 = vmatpush.xpose.msra.mxu0 %v1973
      %2109 = vmatpush.xpose.msra.mxu0 %v1970
      %2110 = vmatpush.xpose.msra.mxu0 %v1967
      %2111 = vmatpush.xpose.msra.mxu0 %v1964
      %2112 = vmatpush.xpose.msra.mxu0 %v1961
      %2113 = vmatpush.xpose.msra.mxu0 %v1958
      %2114 = vmatpush.xpose.msra.mxu0 %v1955
      %2115 = vmatpush.xpose.msra.mxu0 %v1952
      %2116 = vmatpush.xpose.msra.mxu0 %v1949
      %2117 = vmatpush.xpose.msra.mxu0 %v1946
      %2118 = vmatpush.xpose.msra.mxu0 %v1943
      %2119 = vmatmul.f32.gmra.mxu0 %v1799
      %v2120 = vpop.f32.mrf.mxu0
      %v2121 = vadd.f32 0.0, %v2120
      %2122 = vmatmul.f32.gmra.mxu0 %v1802
      %v2123 = vpop.f32.mrf.mxu0
      %v2124 = vadd.f32 0.0, %v2123
      %2125 = vmatmul.f32.gmra.mxu0 %v1805
      %v2126 = vpop.f32.mrf.mxu0
      %v2127 = vadd.f32 0.0, %v2126
      %2128 = vmatmul.f32.gmra.mxu0 %v1808
      %v2129 = vpop.f32.mrf.mxu0
      %v2130 = vadd.f32 0.0, %v2129
      %2131 = vmatmul.f32.gmra.mxu0 %v1811
      %v2132 = vpop.f32.mrf.mxu0
      %v2133 = vadd.f32 0.0, %v2132
      %2134 = vmatmul.f32.gmra.mxu0 %v1814
      %v2135 = vpop.f32.mrf.mxu0
      %v2136 = vadd.f32 0.0, %v2135
      %2137 = vmatmul.f32.gmra.mxu0 %v1817
      %v2138 = vpop.f32.mrf.mxu0
      %v2139 = vadd.f32 0.0, %v2138
      %2140 = vmatmul.f32.gmra.mxu0 %v1820
      %v2141 = vpop.f32.mrf.mxu0
      %v2142 = vadd.f32 0.0, %v2141
      %2143 = vmatmul.f32.gmra.mxu0 %v1823
      %v2144 = vpop.f32.mrf.mxu0
      %v2145 = vadd.f32 0.0, %v2144
      %2146 = vmatmul.f32.gmra.mxu0 %v1826
      %v2147 = vpop.f32.mrf.mxu0
      %v2148 = vadd.f32 0.0, %v2147
      %2149 = vmatmul.f32.gmra.mxu0 %v1829
      %v2150 = vpop.f32.mrf.mxu0
      %v2151 = vadd.f32 0.0, %v2150
      %2152 = vmatmul.f32.gmra.mxu0 %v1832
      %v2153 = vpop.f32.mrf.mxu0
      %v2154 = vadd.f32 0.0, %v2153
      %2155 = vmatmul.f32.gmra.mxu0 %v1835
      %v2156 = vpop.f32.mrf.mxu0
      %v2157 = vadd.f32 0.0, %v2156
      %2158 = vmatmul.f32.gmra.mxu0 %v1838
      %v2159 = vpop.f32.mrf.mxu0
      %v2160 = vadd.f32 0.0, %v2159
      %2161 = vmatmul.f32.gmra.mxu0 %v1841
      %v2162 = vpop.f32.mrf.mxu0
      %v2163 = vadd.f32 0.0, %v2162
      %2164 = vmatmul.f32.gmra.mxu0 %v1844
      %v2165 = vpop.f32.mrf.mxu0
      %v2166 = vadd.f32 0.0, %v2165
      %2167 = vmatmul.f32.gmra.mxu0 %v1847
      %v2168 = vpop.f32.mrf.mxu0
      %v2169 = vadd.f32 0.0, %v2168
      %2170 = vmatmul.f32.gmra.mxu0 %v1850
      %v2171 = vpop.f32.mrf.mxu0
      %v2172 = vadd.f32 0.0, %v2171
      %2173 = vmatmul.f32.gmra.mxu0 %v1853
      %v2174 = vpop.f32.mrf.mxu0
      %v2175 = vadd.f32 0.0, %v2174
      %2176 = vmatmul.f32.gmra.mxu0 %v1856
      %v2177 = vpop.f32.mrf.mxu0
      %v2178 = vadd.f32 0.0, %v2177
      %2179 = vmatmul.f32.gmra.mxu0 %v1859
      %v2180 = vpop.f32.mrf.mxu0
      %v2181 = vadd.f32 0.0, %v2180
      %2182 = vmatmul.f32.gmra.mxu0 %v1862
      %v2183 = vpop.f32.mrf.mxu0
      %v2184 = vadd.f32 0.0, %v2183
      %2185 = vmatmul.f32.gmra.mxu0 %v1865
      %v2186 = vpop.f32.mrf.mxu0
      %v2187 = vadd.f32 0.0, %v2186
      %2188 = vmatmul.f32.gmra.mxu0 %v1868
      %v2189 = vpop.f32.mrf.mxu0
      %v2190 = vadd.f32 0.0, %v2189
      %2191 = vmatmul.f32.gmra.mxu0 %v1871
      %v2192 = vpop.f32.mrf.mxu0
      %v2193 = vadd.f32 0.0, %v2192
      %2194 = vmatmul.f32.gmra.mxu0 %v1874
      %v2195 = vpop.f32.mrf.mxu0
      %v2196 = vadd.f32 0.0, %v2195
      %2197 = vmatmul.f32.gmra.mxu0 %v1877
      %v2198 = vpop.f32.mrf.mxu0
      %v2199 = vadd.f32 0.0, %v2198
      %2200 = vmatmul.f32.gmra.mxu0 %v1880
      %v2201 = vpop.f32.mrf.mxu0
      %v2202 = vadd.f32 0.0, %v2201
      %2203 = vmatmul.f32.gmra.mxu0 %v1883
      %v2204 = vpop.f32.mrf.mxu0
      %v2205 = vadd.f32 0.0, %v2204
      %2206 = vmatmul.f32.gmra.mxu0 %v1886
      %v2207 = vpop.f32.mrf.mxu0
      %v2208 = vadd.f32 0.0, %v2207
      %2209 = vmatmul.f32.gmra.mxu0 %v1889
      %v2210 = vpop.f32.mrf.mxu0
      %v2211 = vadd.f32 0.0, %v2210
      %2212 = vmatmul.f32.gmra.mxu0 %v1892
      %v2213 = vpop.f32.mrf.mxu0
      %v2214 = vadd.f32 0.0, %v2213
      %2215 = vdwg.mxu0
      %v2216 = vmax.f32 %v2008, %v2121
      %2217 = vmax.xlane.f32.xlu0 %v2216
      %v2218 = vpop.xlane.xlu0 %2217
      %v2219 = vmax.f32 %v2011, %v2124
      %2220 = vmax.xlane.f32.xlu0 %v2219
      %v2221 = vpop.xlane.xlu0 %2220
      %v2222 = vmax.f32 %v2014, %v2127
      %2223 = vmax.xlane.f32.xlu0 %v2222
      %v2224 = vpop.xlane.xlu0 %2223
      %v2225 = vmax.f32 %v2017, %v2130
      %2226 = vmax.xlane.f32.xlu0 %v2225
      %v2227 = vpop.xlane.xlu0 %2226
      %v2228 = vmax.f32 %v2020, %v2133
      %2229 = vmax.xlane.f32.xlu0 %v2228
      %v2230 = vpop.xlane.xlu0 %2229
      %v2231 = vmax.f32 %v2023, %v2136
      %2232 = vmax.xlane.f32.xlu0 %v2231
      %v2233 = vpop.xlane.xlu0 %2232
      %v2234 = vmax.f32 %v2026, %v2139
      %2235 = vmax.xlane.f32.xlu0 %v2234
      %v2236 = vpop.xlane.xlu0 %2235
      %v2237 = vmax.f32 %v2029, %v2142
      %2238 = vmax.xlane.f32.xlu0 %v2237
      %v2239 = vpop.xlane.xlu0 %2238
      %v2240 = vmax.f32 %v2032, %v2145
      %2241 = vmax.xlane.f32.xlu0 %v2240
      %v2242 = vpop.xlane.xlu0 %2241
      %v2243 = vmax.f32 %v2035, %v2148
      %2244 = vmax.xlane.f32.xlu0 %v2243
      %v2245 = vpop.xlane.xlu0 %2244
      %v2246 = vmax.f32 %v2038, %v2151
      %2247 = vmax.xlane.f32.xlu0 %v2246
      %v2248 = vpop.xlane.xlu0 %2247
      %v2249 = vmax.f32 %v2041, %v2154
      %2250 = vmax.xlane.f32.xlu0 %v2249
      %v2251 = vpop.xlane.xlu0 %2250
      %v2252 = vmax.f32 %v2044, %v2157
      %2253 = vmax.xlane.f32.xlu0 %v2252
      %v2254 = vpop.xlane.xlu0 %2253
      %v2255 = vmax.f32 %v2047, %v2160
      %2256 = vmax.xlane.f32.xlu0 %v2255
      %v2257 = vpop.xlane.xlu0 %2256
      %v2258 = vmax.f32 %v2050, %v2163
      %2259 = vmax.xlane.f32.xlu0 %v2258
      %v2260 = vpop.xlane.xlu0 %2259
      %v2261 = vmax.f32 %v2053, %v2166
      %2262 = vmax.xlane.f32.xlu0 %v2261
      %v2263 = vpop.xlane.xlu0 %2262
      %v2264 = vmax.f32 %v2056, %v2169
      %2265 = vmax.xlane.f32.xlu0 %v2264
      %v2266 = vpop.xlane.xlu0 %2265
      %v2267 = vmax.f32 %v2059, %v2172
      %2268 = vmax.xlane.f32.xlu0 %v2267
      %v2269 = vpop.xlane.xlu0 %2268
      %v2270 = vmax.f32 %v2062, %v2175
      %2271 = vmax.xlane.f32.xlu0 %v2270
      %v2272 = vpop.xlane.xlu0 %2271
      %v2273 = vmax.f32 %v2065, %v2178
      %2274 = vmax.xlane.f32.xlu0 %v2273
      %v2275 = vpop.xlane.xlu0 %2274
      %v2276 = vmax.f32 %v2068, %v2181
      %2277 = vmax.xlane.f32.xlu0 %v2276
      %v2278 = vpop.xlane.xlu0 %2277
      %v2279 = vmax.f32 %v2071, %v2184
      %2280 = vmax.xlane.f32.xlu0 %v2279
      %v2281 = vpop.xlane.xlu0 %2280
      %v2282 = vmax.f32 %v2074, %v2187
      %2283 = vmax.xlane.f32.xlu0 %v2282
      %v2284 = vpop.xlane.xlu0 %2283
      %v2285 = vmax.f32 %v2077, %v2190
      %2286 = vmax.xlane.f32.xlu0 %v2285
      %v2287 = vpop.xlane.xlu0 %2286
      %v2288 = vmax.f32 %v2080, %v2193
      %2289 = vmax.xlane.f32.xlu0 %v2288
      %v2290 = vpop.xlane.xlu0 %2289
      %v2291 = vmax.f32 %v2083, %v2196
      %2292 = vmax.xlane.f32.xlu0 %v2291
      %v2293 = vpop.xlane.xlu0 %2292
      %v2294 = vmax.f32 %v2086, %v2199
      %2295 = vmax.xlane.f32.xlu0 %v2294
      %v2296 = vpop.xlane.xlu0 %2295
      %v2297 = vmax.f32 %v2089, %v2202
      %2298 = vmax.xlane.f32.xlu0 %v2297
      %v2299 = vpop.xlane.xlu0 %2298
      %v2300 = vmax.f32 %v2092, %v2205
      %2301 = vmax.xlane.f32.xlu0 %v2300
      %v2302 = vpop.xlane.xlu0 %2301
      %v2303 = vmax.f32 %v2095, %v2208
      %2304 = vmax.xlane.f32.xlu0 %v2303
      %v2305 = vpop.xlane.xlu0 %2304
      %v2306 = vmax.f32 %v2098, %v2211
      %2307 = vmax.xlane.f32.xlu0 %v2306
      %v2308 = vpop.xlane.xlu0 %2307
      %v2309 = vmax.f32 %v2101, %v2214
      %2310 = vmax.xlane.f32.xlu0 %v2309
      %v2311 = vpop.xlane.xlu0 %2310
      %v2312 = vsub.f32 %v2008, %v2218
      %v2313 = vsub.f32 %v2121, %v2218
      %v2314 = vsub.f32 %v2011, %v2221
      %v2315 = vsub.f32 %v2124, %v2221
      %v2316 = vsub.f32 %v2014, %v2224
      %v2317 = vsub.f32 %v2127, %v2224
      %v2318 = vsub.f32 %v2017, %v2227
      %v2319 = vsub.f32 %v2130, %v2227
      %v2320 = vsub.f32 %v2020, %v2230
      %v2321 = vsub.f32 %v2133, %v2230
      %v2322 = vsub.f32 %v2023, %v2233
      %v2323 = vsub.f32 %v2136, %v2233
      %v2324 = vsub.f32 %v2026, %v2236
      %v2325 = vsub.f32 %v2139, %v2236
      %v2326 = vsub.f32 %v2029, %v2239
      %v2327 = vsub.f32 %v2142, %v2239
      %v2328 = vsub.f32 %v2032, %v2242
      %v2329 = vsub.f32 %v2145, %v2242
      %v2330 = vsub.f32 %v2035, %v2245
      %v2331 = vsub.f32 %v2148, %v2245
      %v2332 = vsub.f32 %v2038, %v2248
      %v2333 = vsub.f32 %v2151, %v2248
      %v2334 = vsub.f32 %v2041, %v2251
      %v2335 = vsub.f32 %v2154, %v2251
      %v2336 = vsub.f32 %v2044, %v2254
      %v2337 = vsub.f32 %v2157, %v2254
      %v2338 = vsub.f32 %v2047, %v2257
      %v2339 = vsub.f32 %v2160, %v2257
      %v2340 = vsub.f32 %v2050, %v2260
      %v2341 = vsub.f32 %v2163, %v2260
      %v2342 = vsub.f32 %v2053, %v2263
      %v2343 = vsub.f32 %v2166, %v2263
      %v2344 = vsub.f32 %v2056, %v2266
      %v2345 = vsub.f32 %v2169, %v2266
      %v2346 = vsub.f32 %v2059, %v2269
      %v2347 = vsub.f32 %v2172, %v2269
      %v2348 = vsub.f32 %v2062, %v2272
      %v2349 = vsub.f32 %v2175, %v2272
      %v2350 = vsub.f32 %v2065, %v2275
      %v2351 = vsub.f32 %v2178, %v2275
      %v2352 = vsub.f32 %v2068, %v2278
      %v2353 = vsub.f32 %v2181, %v2278
      %v2354 = vsub.f32 %v2071, %v2281
      %v2355 = vsub.f32 %v2184, %v2281
      %v2356 = vsub.f32 %v2074, %v2284
      %v2357 = vsub.f32 %v2187, %v2284
      %v2358 = vsub.f32 %v2077, %v2287
      %v2359 = vsub.f32 %v2190, %v2287
      %v2360 = vsub.f32 %v2080, %v2290
      %v2361 = vsub.f32 %v2193, %v2290
      %v2362 = vsub.f32 %v2083, %v2293
      %v2363 = vsub.f32 %v2196, %v2293
      %v2364 = vsub.f32 %v2086, %v2296
      %v2365 = vsub.f32 %v2199, %v2296
      %v2366 = vsub.f32 %v2089, %v2299
      %v2367 = vsub.f32 %v2202, %v2299
      %v2368 = vsub.f32 %v2092, %v2302
      %v2369 = vsub.f32 %v2205, %v2302
      %v2370 = vsub.f32 %v2095, %v2305
      %v2371 = vsub.f32 %v2208, %v2305
      %v2372 = vsub.f32 %v2098, %v2308
      %v2373 = vsub.f32 %v2211, %v2308
      %v2374 = vsub.f32 %v2101, %v2311
      %v2375 = vsub.f32 %v2214, %v2311
      %v2376 = vmul.f32 %v2312, 1.442695
      %v2377 = vpow.pop %v2376
      %v2378 = vmul.f32 %v2313, 1.442695
      %v2379 = vpow.pop %v2378
      %v2380 = vmul.f32 %v2314, 1.442695
      %v2381 = vpow.pop %v2380
      %v2382 = vmul.f32 %v2315, 1.442695
      %v2383 = vpow.pop %v2382
      %v2384 = vmul.f32 %v2316, 1.442695
      %v2385 = vpow.pop %v2384
      %v2386 = vmul.f32 %v2317, 1.442695
      %v2387 = vpow.pop %v2386
      %v2388 = vmul.f32 %v2318, 1.442695
      %v2389 = vpow.pop %v2388
      %v2390 = vmul.f32 %v2319, 1.442695
      %v2391 = vpow.pop %v2390
      %v2392 = vmul.f32 %v2320, 1.442695
      %v2393 = vpow.pop %v2392
      %v2394 = vmul.f32 %v2321, 1.442695
      %v2395 = vpow.pop %v2394
      %v2396 = vmul.f32 %v2322, 1.442695
      %v2397 = vpow.pop %v2396
      %v2398 = vmul.f32 %v2323, 1.442695
      %v2399 = vpow.pop %v2398
      %v2400 = vmul.f32 %v2324, 1.442695
      %v2401 = vpow.pop %v2400
      %v2402 = vmul.f32 %v2325, 1.442695
      %v2403 = vpow.pop %v2402
      %v2404 = vmul.f32 %v2326, 1.442695
      %v2405 = vpow.pop %v2404
      %v2406 = vmul.f32 %v2327, 1.442695
      %v2407 = vpow.pop %v2406
      %v2408 = vmul.f32 %v2328, 1.442695
      %v2409 = vpow.pop %v2408
      %v2410 = vmul.f32 %v2329, 1.442695
      %v2411 = vpow.pop %v2410
      %v2412 = vmul.f32 %v2330, 1.442695
      %v2413 = vpow.pop %v2412
      %v2414 = vmul.f32 %v2331, 1.442695
      %v2415 = vpow.pop %v2414
      %v2416 = vmul.f32 %v2332, 1.442695
      %v2417 = vpow.pop %v2416
      %v2418 = vmul.f32 %v2333, 1.442695
      %v2419 = vpow.pop %v2418
      %v2420 = vmul.f32 %v2334, 1.442695
      %v2421 = vpow.pop %v2420
      %v2422 = vmul.f32 %v2335, 1.442695
      %v2423 = vpow.pop %v2422
      %v2424 = vmul.f32 %v2336, 1.442695
      %v2425 = vpow.pop %v2424
      %v2426 = vmul.f32 %v2337, 1.442695
      %v2427 = vpow.pop %v2426
      %v2428 = vmul.f32 %v2338, 1.442695
      %v2429 = vpow.pop %v2428
      %v2430 = vmul.f32 %v2339, 1.442695
      %v2431 = vpow.pop %v2430
      %v2432 = vmul.f32 %v2340, 1.442695
      %v2433 = vpow.pop %v2432
      %v2434 = vmul.f32 %v2341, 1.442695
      %v2435 = vpow.pop %v2434
      %v2436 = vmul.f32 %v2342, 1.442695
      %v2437 = vpow.pop %v2436
      %v2438 = vmul.f32 %v2343, 1.442695
      %v2439 = vpow.pop %v2438
      %v2440 = vmul.f32 %v2344, 1.442695
      %v2441 = vpow.pop %v2440
      %v2442 = vmul.f32 %v2345, 1.442695
      %v2443 = vpow.pop %v2442
      %v2444 = vmul.f32 %v2346, 1.442695
      %v2445 = vpow.pop %v2444
      %v2446 = vmul.f32 %v2347, 1.442695
      %v2447 = vpow.pop %v2446
      %v2448 = vmul.f32 %v2348, 1.442695
      %v2449 = vpow.pop %v2448
      %v2450 = vmul.f32 %v2349, 1.442695
      %v2451 = vpow.pop %v2450
      %v2452 = vmul.f32 %v2350, 1.442695
      %v2453 = vpow.pop %v2452
      %v2454 = vmul.f32 %v2351, 1.442695
      %v2455 = vpow.pop %v2454
      %v2456 = vmul.f32 %v2352, 1.442695
      %v2457 = vpow.pop %v2456
      %v2458 = vmul.f32 %v2353, 1.442695
      %v2459 = vpow.pop %v2458
      %v2460 = vmul.f32 %v2354, 1.442695
      %v2461 = vpow.pop %v2460
      %v2462 = vmul.f32 %v2355, 1.442695
      %v2463 = vpow.pop %v2462
      %v2464 = vmul.f32 %v2356, 1.442695
      %v2465 = vpow.pop %v2464
      %v2466 = vmul.f32 %v2357, 1.442695
      %v2467 = vpow.pop %v2466
      %v2468 = vmul.f32 %v2358, 1.442695
      %v2469 = vpow.pop %v2468
      %v2470 = vmul.f32 %v2359, 1.442695
      %v2471 = vpow.pop %v2470
      %v2472 = vmul.f32 %v2360, 1.442695
      %v2473 = vpow.pop %v2472
      %v2474 = vmul.f32 %v2361, 1.442695
      %v2475 = vpow.pop %v2474
      %v2476 = vmul.f32 %v2362, 1.442695
      %v2477 = vpow.pop %v2476
      %v2478 = vmul.f32 %v2363, 1.442695
      %v2479 = vpow.pop %v2478
      %v2480 = vmul.f32 %v2364, 1.442695
      %v2481 = vpow.pop %v2480
      %v2482 = vmul.f32 %v2365, 1.442695
      %v2483 = vpow.pop %v2482
      %v2484 = vmul.f32 %v2366, 1.442695
      %v2485 = vpow.pop %v2484
      %v2486 = vmul.f32 %v2367, 1.442695
      %v2487 = vpow.pop %v2486
      %v2488 = vmul.f32 %v2368, 1.442695
      %v2489 = vpow.pop %v2488
      %v2490 = vmul.f32 %v2369, 1.442695
      %v2491 = vpow.pop %v2490
      %v2492 = vmul.f32 %v2370, 1.442695
      %v2493 = vpow.pop %v2492
      %v2494 = vmul.f32 %v2371, 1.442695
      %v2495 = vpow.pop %v2494
      %v2496 = vmul.f32 %v2372, 1.442695
      %v2497 = vpow.pop %v2496
      %v2498 = vmul.f32 %v2373, 1.442695
      %v2499 = vpow.pop %v2498
      %v2500 = vmul.f32 %v2374, 1.442695
      %v2501 = vpow.pop %v2500
      %v2502 = vmul.f32 %v2375, 1.442695
      %v2503 = vpow.pop %v2502
      %v2504 = vadd.f32 %v2377, %v2379
      %2505 = vadd.xlane.f32.xlu0 %v2504
      %v2506 = vpop.xlane.xlu0 %2505
      %v2507 = vadd.f32 %v2381, %v2383
      %2508 = vadd.xlane.f32.xlu0 %v2507
      %v2509 = vpop.xlane.xlu0 %2508
      %v2510 = vadd.f32 %v2385, %v2387
      %2511 = vadd.xlane.f32.xlu0 %v2510
      %v2512 = vpop.xlane.xlu0 %2511
      %v2513 = vadd.f32 %v2389, %v2391
      %2514 = vadd.xlane.f32.xlu0 %v2513
      %v2515 = vpop.xlane.xlu0 %2514
      %v2516 = vadd.f32 %v2393, %v2395
      %2517 = vadd.xlane.f32.xlu0 %v2516
      %v2518 = vpop.xlane.xlu0 %2517
      %v2519 = vadd.f32 %v2397, %v2399
      %2520 = vadd.xlane.f32.xlu0 %v2519
      %v2521 = vpop.xlane.xlu0 %2520
      %v2522 = vadd.f32 %v2401, %v2403
      %2523 = vadd.xlane.f32.xlu0 %v2522
      %v2524 = vpop.xlane.xlu0 %2523
      %v2525 = vadd.f32 %v2405, %v2407
      %2526 = vadd.xlane.f32.xlu0 %v2525
      %v2527 = vpop.xlane.xlu0 %2526
      %v2528 = vadd.f32 %v2409, %v2411
      %2529 = vadd.xlane.f32.xlu0 %v2528
      %v2530 = vpop.xlane.xlu0 %2529
      %v2531 = vadd.f32 %v2413, %v2415
      %2532 = vadd.xlane.f32.xlu0 %v2531
      %v2533 = vpop.xlane.xlu0 %2532
      %v2534 = vadd.f32 %v2417, %v2419
      %2535 = vadd.xlane.f32.xlu0 %v2534
      %v2536 = vpop.xlane.xlu0 %2535
      %v2537 = vadd.f32 %v2421, %v2423
      %2538 = vadd.xlane.f32.xlu0 %v2537
      %v2539 = vpop.xlane.xlu0 %2538
      %v2540 = vadd.f32 %v2425, %v2427
      %2541 = vadd.xlane.f32.xlu0 %v2540
      %v2542 = vpop.xlane.xlu0 %2541
      %v2543 = vadd.f32 %v2429, %v2431
      %2544 = vadd.xlane.f32.xlu0 %v2543
      %v2545 = vpop.xlane.xlu0 %2544
      %v2546 = vadd.f32 %v2433, %v2435
      %2547 = vadd.xlane.f32.xlu0 %v2546
      %v2548 = vpop.xlane.xlu0 %2547
      %v2549 = vadd.f32 %v2437, %v2439
      %2550 = vadd.xlane.f32.xlu0 %v2549
      %v2551 = vpop.xlane.xlu0 %2550
      %v2552 = vadd.f32 %v2441, %v2443
      %2553 = vadd.xlane.f32.xlu0 %v2552
      %v2554 = vpop.xlane.xlu0 %2553
      %v2555 = vadd.f32 %v2445, %v2447
      %2556 = vadd.xlane.f32.xlu0 %v2555
      %v2557 = vpop.xlane.xlu0 %2556
      %v2558 = vadd.f32 %v2449, %v2451
      %2559 = vadd.xlane.f32.xlu0 %v2558
      %v2560 = vpop.xlane.xlu0 %2559
      %v2561 = vadd.f32 %v2453, %v2455
      %2562 = vadd.xlane.f32.xlu0 %v2561
      %v2563 = vpop.xlane.xlu0 %2562
      %v2564 = vadd.f32 %v2457, %v2459
      %2565 = vadd.xlane.f32.xlu0 %v2564
      %v2566 = vpop.xlane.xlu0 %2565
      %v2567 = vadd.f32 %v2461, %v2463
      %2568 = vadd.xlane.f32.xlu0 %v2567
      %v2569 = vpop.xlane.xlu0 %2568
      %v2570 = vadd.f32 %v2465, %v2467
      %2571 = vadd.xlane.f32.xlu0 %v2570
      %v2572 = vpop.xlane.xlu0 %2571
      %v2573 = vadd.f32 %v2469, %v2471
      %2574 = vadd.xlane.f32.xlu0 %v2573
      %v2575 = vpop.xlane.xlu0 %2574
      %v2576 = vadd.f32 %v2473, %v2475
      %2577 = vadd.xlane.f32.xlu0 %v2576
      %v2578 = vpop.xlane.xlu0 %2577
      %v2579 = vadd.f32 %v2477, %v2479
      %2580 = vadd.xlane.f32.xlu0 %v2579
      %v2581 = vpop.xlane.xlu0 %2580
      %v2582 = vadd.f32 %v2481, %v2483
      %2583 = vadd.xlane.f32.xlu0 %v2582
      %v2584 = vpop.xlane.xlu0 %2583
      %v2585 = vadd.f32 %v2485, %v2487
      %2586 = vadd.xlane.f32.xlu0 %v2585
      %v2587 = vpop.xlane.xlu0 %2586
      %v2588 = vadd.f32 %v2489, %v2491
      %2589 = vadd.xlane.f32.xlu0 %v2588
      %v2590 = vpop.xlane.xlu0 %2589
      %v2591 = vadd.f32 %v2493, %v2495
      %2592 = vadd.xlane.f32.xlu0 %v2591
      %v2593 = vpop.xlane.xlu0 %2592
      %v2594 = vadd.f32 %v2497, %v2499
      %2595 = vadd.xlane.f32.xlu0 %v2594
      %v2596 = vpop.xlane.xlu0 %2595
      %v2597 = vadd.f32 %v2501, %v2503
      %2598 = vadd.xlane.f32.xlu0 %v2597
      %v2599 = vpop.xlane.xlu0 %2598
      %v2600 = vlog2.pop %v2506
      %v2601 = vmul.f32 %v2600, 0.6931472
      %v2602 = vlog2.pop %v2509
      %v2603 = vmul.f32 %v2602, 0.6931472
      %v2604 = vlog2.pop %v2512
      %v2605 = vmul.f32 %v2604, 0.6931472
      %v2606 = vlog2.pop %v2515
      %v2607 = vmul.f32 %v2606, 0.6931472
      %v2608 = vlog2.pop %v2518
      %v2609 = vmul.f32 %v2608, 0.6931472
      %v2610 = vlog2.pop %v2521
      %v2611 = vmul.f32 %v2610, 0.6931472
      %v2612 = vlog2.pop %v2524
      %v2613 = vmul.f32 %v2612, 0.6931472
      %v2614 = vlog2.pop %v2527
      %v2615 = vmul.f32 %v2614, 0.6931472
      %v2616 = vlog2.pop %v2530
      %v2617 = vmul.f32 %v2616, 0.6931472
      %v2618 = vlog2.pop %v2533
      %v2619 = vmul.f32 %v2618, 0.6931472
      %v2620 = vlog2.pop %v2536
      %v2621 = vmul.f32 %v2620, 0.6931472
      %v2622 = vlog2.pop %v2539
      %v2623 = vmul.f32 %v2622, 0.6931472
      %v2624 = vlog2.pop %v2542
      %v2625 = vmul.f32 %v2624, 0.6931472
      %v2626 = vlog2.pop %v2545
      %v2627 = vmul.f32 %v2626, 0.6931472
      %v2628 = vlog2.pop %v2548
      %v2629 = vmul.f32 %v2628, 0.6931472
      %v2630 = vlog2.pop %v2551
      %v2631 = vmul.f32 %v2630, 0.6931472
      %v2632 = vlog2.pop %v2554
      %v2633 = vmul.f32 %v2632, 0.6931472
      %v2634 = vlog2.pop %v2557
      %v2635 = vmul.f32 %v2634, 0.6931472
      %v2636 = vlog2.pop %v2560
      %v2637 = vmul.f32 %v2636, 0.6931472
      %v2638 = vlog2.pop %v2563
      %v2639 = vmul.f32 %v2638, 0.6931472
      %v2640 = vlog2.pop %v2566
      %v2641 = vmul.f32 %v2640, 0.6931472
      %v2642 = vlog2.pop %v2569
      %v2643 = vmul.f32 %v2642, 0.6931472
      %v2644 = vlog2.pop %v2572
      %v2645 = vmul.f32 %v2644, 0.6931472
      %v2646 = vlog2.pop %v2575
      %v2647 = vmul.f32 %v2646, 0.6931472
      %v2648 = vlog2.pop %v2578
      %v2649 = vmul.f32 %v2648, 0.6931472
      %v2650 = vlog2.pop %v2581
      %v2651 = vmul.f32 %v2650, 0.6931472
      %v2652 = vlog2.pop %v2584
      %v2653 = vmul.f32 %v2652, 0.6931472
      %v2654 = vlog2.pop %v2587
      %v2655 = vmul.f32 %v2654, 0.6931472
      %v2656 = vlog2.pop %v2590
      %v2657 = vmul.f32 %v2656, 0.6931472
      %v2658 = vlog2.pop %v2593
      %v2659 = vmul.f32 %v2658, 0.6931472
      %v2660 = vlog2.pop %v2596
      %v2661 = vmul.f32 %v2660, 0.6931472
      %v2662 = vlog2.pop %v2599
      %v2663 = vmul.f32 %v2662, 0.6931472
      %v2664 = vadd.f32 %v2218, %v2601
      %v2665 = vadd.f32 %v2221, %v2603
      %v2666 = vadd.f32 %v2224, %v2605
      %v2667 = vadd.f32 %v2227, %v2607
      %v2668 = vadd.f32 %v2230, %v2609
      %v2669 = vadd.f32 %v2233, %v2611
      %v2670 = vadd.f32 %v2236, %v2613
      %v2671 = vadd.f32 %v2239, %v2615
      %v2672 = vadd.f32 %v2242, %v2617
      %v2673 = vadd.f32 %v2245, %v2619
      %v2674 = vadd.f32 %v2248, %v2621
      %v2675 = vadd.f32 %v2251, %v2623
      %v2676 = vadd.f32 %v2254, %v2625
      %v2677 = vadd.f32 %v2257, %v2627
      %v2678 = vadd.f32 %v2260, %v2629
      %v2679 = vadd.f32 %v2263, %v2631
      %v2680 = vadd.f32 %v2266, %v2633
      %v2681 = vadd.f32 %v2269, %v2635
      %v2682 = vadd.f32 %v2272, %v2637
      %v2683 = vadd.f32 %v2275, %v2639
      %v2684 = vadd.f32 %v2278, %v2641
      %v2685 = vadd.f32 %v2281, %v2643
      %v2686 = vadd.f32 %v2284, %v2645
      %v2687 = vadd.f32 %v2287, %v2647
      %v2688 = vadd.f32 %v2290, %v2649
      %v2689 = vadd.f32 %v2293, %v2651
      %v2690 = vadd.f32 %v2296, %v2653
      %v2691 = vadd.f32 %v2299, %v2655
      %v2692 = vadd.f32 %v2302, %v2657
      %v2693 = vadd.f32 %v2305, %v2659
      %v2694 = vadd.f32 %v2308, %v2661
      %v2695 = vadd.f32 %v2311, %v2663
      %v2696 = vld [vmem:[#allocation3] sm:$0x1]
      %v2697 = vsub.f32 %v2664, %v1672
      %v2698 = vsub.f32 %v2665, %v1675
      %v2699 = vsub.f32 %v2666, %v1678
      %v2700 = vsub.f32 %v2667, %v1681
      %v2701 = vsub.f32 %v2668, %v1684
      %v2702 = vsub.f32 %v2669, %v1687
      %v2703 = vsub.f32 %v2670, %v1690
      %v2704 = vsub.f32 %v2671, %v1693
      %v2705 = vsub.f32 %v2672, %v1696
      %v2706 = vsub.f32 %v2673, %v1699
      %v2707 = vsub.f32 %v2674, %v1702
      %v2708 = vsub.f32 %v2675, %v1705
      %v2709 = vsub.f32 %v2676, %v1708
      %v2710 = vsub.f32 %v2677, %v1711
      %v2711 = vsub.f32 %v2678, %v1714
      %v2712 = vsub.f32 %v2679, %v1717
      %v2713 = vsub.f32 %v2680, %v1720
      %v2714 = vsub.f32 %v2681, %v1723
      %v2715 = vsub.f32 %v2682, %v1726
      %v2716 = vsub.f32 %v2683, %v1729
      %v2717 = vsub.f32 %v2684, %v1732
      %v2718 = vsub.f32 %v2685, %v1735
      %v2719 = vsub.f32 %v2686, %v1738
      %v2720 = vsub.f32 %v2687, %v1741
      %v2721 = vsub.f32 %v2688, %v1744
      %v2722 = vsub.f32 %v2689, %v1747
      %v2723 = vsub.f32 %v2690, %v1750
      %v2724 = vsub.f32 %v2691, %v1753
      %v2725 = vsub.f32 %v2692, %v1756
      %v2726 = vsub.f32 %v2693, %v1759
      %v2727 = vsub.f32 %v2694, %v1762
      %v2728 = vsub.f32 %v2695, %v1765
      %v2729 = vadd.f32 %v2697, %v2698
      %v2730 = vadd.f32 %v2729, %v2699
      %v2731 = vadd.f32 %v2730, %v2700
      %v2732 = vadd.f32 %v2731, %v2701
      %v2733 = vadd.f32 %v2732, %v2702
      %v2734 = vadd.f32 %v2733, %v2703
      %v2735 = vadd.f32 %v2734, %v2704
      %v2736 = vadd.f32 %v2735, %v2705
      %v2737 = vadd.f32 %v2736, %v2706
      %v2738 = vadd.f32 %v2737, %v2707
      %v2739 = vadd.f32 %v2738, %v2708
      %v2740 = vadd.f32 %v2739, %v2709
      %v2741 = vadd.f32 %v2740, %v2710
      %v2742 = vadd.f32 %v2741, %v2711
      %v2743 = vadd.f32 %v2742, %v2712
      %v2744 = vadd.f32 %v2743, %v2713
      %v2745 = vadd.f32 %v2744, %v2714
      %v2746 = vadd.f32 %v2745, %v2715
      %v2747 = vadd.f32 %v2746, %v2716
      %v2748 = vadd.f32 %v2747, %v2717
      %v2749 = vadd.f32 %v2748, %v2718
      %v2750 = vadd.f32 %v2749, %v2719
      %v2751 = vadd.f32 %v2750, %v2720
      %v2752 = vadd.f32 %v2751, %v2721
      %v2753 = vadd.f32 %v2752, %v2722
      %v2754 = vadd.f32 %v2753, %v2723
      %v2755 = vadd.f32 %v2754, %v2724
      %v2756 = vadd.f32 %v2755, %v2725
      %v2757 = vadd.f32 %v2756, %v2726
      %v2758 = vadd.f32 %v2757, %v2727
      %v2759 = vadd.f32 %v2758, %v2728
      %v2760 = vrot.slane %v2759, 4
      %v2761 = vadd.f32 %v2759, %v2760
      %v2762 = vrot.slane %v2761, 2
      %v2763 = vadd.f32 %v2761, %v2762
      %v2764 = vrot.slane %v2763, 1
      %v2765 = vadd.f32 %v2763, %v2764
      %v2766 = vadd.f32 %v2696, %v2765
      %vm2767 = vcmask 0
      %2768 = vst.msk [vmem:[#allocation3] sm:$0x1] %vm2767, %v2766
      // Predicated region
      $region33: #{tpu_custom_call.1} parent=27 // pred_check
        %p2769 = pneg %p188
      $region34: #{tpu_custom_call.1} parent=27 // pred_check_branch
        %2771 = sbr.rel (%p2769) target = $region36
      $region35: #{tpu_custom_call.1} parent=27 // pred_region
        %v2772 = vld [vmem:[#allocation3] sm:$0x1]
        %2773 = vst.msk [vmem:[%s187] sm:$0x1] %vm2767, %v2772
      $region36: #{tpu_custom_call.1} parent=27 // pred_fallthru
        _
      %p2774 = scmp.lt.s32.totalorder %s17, 1
      %s2775 = scalar_select %p2774, %s17, 1
      %s2776 = scalar_lea.vmem %s2, %s2775
      // Predicated region
      $region37: #{tpu_custom_call.1} parent=27 // pred_check
        %p2777 = pneg %p97
      $region38: #{tpu_custom_call.1} parent=27 // pred_check_branch
        %2779 = sbr.rel (%p2777) target = $region40
      $region39: #{tpu_custom_call.1} parent=27 // pred_region
        _
      $region40: #{tpu_custom_call.1} parent=27 // pred_fallthru
        _
    $region28: #{tpu_custom_call.1} parent=5 // pred_fallthru
      _
    %p2780 = scmp.le.s32.totalorder 2, %s8
    // Predicated region
    $region41: #{tpu_custom_call.1} parent=5 // pred_check
      %p2781 = pneg %p2780
    $region42: #{tpu_custom_call.1} parent=5 // pred_check_branch
      %2783 = sbr.rel (%p2781) target = $region44
    $region43: #{tpu_custom_call.1} parent=5 // pred_region
      %s2784 = ssub.s32 %s8, 2
      // Predicated region
      $region45: #{tpu_custom_call.1} parent=43 // pred_check
        %p2785 = pneg %p103
      $region46: #{tpu_custom_call.1} parent=43 // pred_check_branch
        %2787 = sbr.rel (%p2785) target = $region48
      $region47: #{tpu_custom_call.1} parent=43 // pred_region
        %p2788 = scmp.lt.s32.totalorder %s19, 1
        %s2789 = scalar_select %p2788, %s19, 1
        %s2790 = scalar_lea.vmem %s2, %s2789
      $region48: #{tpu_custom_call.1} parent=43 // pred_fallthru
        _
    $region44: #{tpu_custom_call.1} parent=5 // pred_fallthru
      _
  $region6: #{tpu_custom_call.1} parent=0 // loop_footer
    %s12 = sadd.s32 1, %s8
  $region7: #{tpu_custom_call.1} parent=0 // loop_footer_branch
    %7 = sbr.rel target = $region3
  $region8: #{tpu_custom_call.1} parent=0 // loop_exit
    _

</llo_original>
